<compile_context>
chip_gen: v7x
topology: tpu7x:2x2x1
jax: 0.10.0
libtpu: 0.0.40
codegen_flags: <defaults>
</compile_context>

<pallas_src>
import jax
import jax.numpy as jnp
from jax.experimental import pallas as pl
from jax.experimental.pallas import tpu as pltpu

LANE = 128


def rnn_seq_kernel(x_ref, scal_ref, h0_ref, wxh_bh_ref, wfused_ref,
                   out_ref, hfin_ref):
    """One fused kernel over T timesteps.

    x_ref      : SMEM (T,)        f32   input sequence (one scalar per step)
    scal_ref   : SMEM (2,)        f32   [wxo, bo] scalar weights
    h0_ref     : VMEM (1, H)      f32   initial hidden state
    wxh_bh_ref : VMEM (2, H)      f32   row0 = wxh (x->hidden), row1 = b_h
    wfused_ref : VMEM (H, Hp+128) f32   cols [0:H) = whh, cols [Hp:Hp+128) = who^T tiled
    out_ref    : VMEM (R, 128)    f32   lane-dense per-step outputs (R = ceil(T/128))
    hfin_ref   : VMEM (1, H)      f32   final hidden state
    """
    H = h0_ref.shape[1]
    T = x_ref.shape[0]
    Hp = wfused_ref.shape[1] - LANE

    # zero the (padded) lane-dense output buffer once
    out_ref[...] = jnp.zeros_like(out_ref)

    # loop-invariant reads, hoisted (JAX does not CSE broadcasts inside loops)
    wxh = wxh_bh_ref[0:1, :]          # (1, H)
    bh = wxh_bh_ref[1:2, :]           # (1, H)
    wxo = scal_ref[0]                 # scalar
    bo = scal_ref[1]                  # scalar
    lane_ids = jax.lax.broadcasted_iota(jnp.int32, (1, LANE), 1)

    def step(t, h):
        x_t = x_ref[t]                                                  # scalar

        # one MXU matmul gives both h @ whh (cols :H) and h @ who^T
        # replicated across the last 128 lanes (cols Hp:).
        g = jnp.dot(h, wfused_ref[...], preferred_element_type=jnp.float32)

        h_new = x_t * wxh + g[:, :H] + bh                               # (1, H)
        o_vec = x_t * wxo + g[:, Hp:] + bo                              # (1, 128), all lanes == out_t

        lane = t % LANE
        if out_ref.shape[0] == 1:                                       # static branch (trace time)
            out_ref[...] = jnp.where(lane_ids == lane, o_vec, out_ref[...])
        else:
            row = t // LANE
            cur = out_ref[pl.ds(row, 1), :]
            out_ref[pl.ds(row, 1), :] = jnp.where(lane_ids == lane, o_vec, cur)
        return h_new

    h_final = jax.lax.fori_loop(0, T, step, h0_ref[...], unroll=(T <= 32))
    hfin_ref[...] = h_final


def init_params(key, hidden=128):
    """nn.Linear-style init: U[-1/sqrt(fan_in), 1/sqrt(fan_in)]."""
    k1, k2, k3, k4 = jax.random.split(key, 4)
    fan_in = 1 + hidden
    bound = 1.0 / jnp.sqrt(fan_in)
    return {
        "W_h": jax.random.uniform(k1, (hidden, fan_in), jnp.float32, -bound, bound),
        "b_h": jax.random.uniform(k2, (hidden,), jnp.float32, -bound, bound),
        "W_o": jax.random.uniform(k3, (1, fan_in), jnp.float32, -bound, bound),
        "b_o": jax.random.uniform(k4, (1,), jnp.float32, -bound, bound),
    }


def prep_params(params):
    """One-time weight repacking (hoisted out of the per-call path)."""
    W_h, b_h = params["W_h"].astype(jnp.float32), params["b_h"].astype(jnp.float32)
    W_o, b_o = params["W_o"].astype(jnp.float32), params["b_o"].astype(jnp.float32)
    H = W_h.shape[0]
    Hp = -(-H // LANE) * LANE                       # round H up to lane multiple

    whh = W_h[:, 1:].T                              # (H, H)   hidden -> hidden
    who_col = W_o[:, 1:].T                          # (H, 1)   hidden -> out
    wfused = jnp.zeros((H, Hp + LANE), jnp.float32)
    wfused = wfused.at[:, :H].set(whh)
    wfused = wfused.at[:, Hp:].set(jnp.tile(who_col, (1, LANE)))

    wxh_bh = jnp.stack([W_h[:, 0], b_h], axis=0)    # (2, H): row0 = wxh, row1 = b_h
    scal = jnp.array([W_o[0, 0], b_o[0]], jnp.float32)  # [wxo, bo]
    return {"wfused": wfused, "wxh_bh": wxh_bh, "scal": scal, "H": H}


def rnn_forward_sequence(x_seq, h0, pp):
    """Run T RNN steps in one kernel. x_seq: (T,), h0: (1, H).

    Returns (outs (T, 1), h_final (1, H)).
    """
    x_seq = x_seq.reshape(-1).astype(jnp.float32)
    T = x_seq.shape[0]
    H = pp["H"]
    R = -(-T // LANE)                               # ceil(T / 128) output rows
    h0 = h0.astype(jnp.float32).reshape(1, H)

    smem = pl.BlockSpec(memory_space=pltpu.MemorySpace.SMEM)
    vmem = pl.BlockSpec(memory_space=pltpu.MemorySpace.VMEM)

    out_rows, h_final = pl.pallas_call(
        rnn_seq_kernel,
        out_shape=(
            jax.ShapeDtypeStruct((R, LANE), jnp.float32),
            jax.ShapeDtypeStruct((1, H), jnp.float32),
        ),
        in_specs=[smem, smem, vmem, vmem, vmem],
        out_specs=(vmem, vmem),
    )(x_seq, pp["scal"], h0, pp["wxh_bh"], pp["wfused"])

    outs = out_rows.reshape(-1)[:T].reshape(T, 1)
    return outs, h_final


def rnn_forward(x, hidden, pp):
    """Single-step API matching the PyTorch module forward: x (1,), hidden (1,H)."""
    outs, h_new = rnn_forward_sequence(x, hidden, pp)
    return outs[0:1, :], h_new


# ---------------- pure-JAX reference (original weight layout) ----------------
def rnn_step_ref(x, hidden, params):
    conc = jnp.concatenate([x.reshape(1, 1), hidden], axis=1)
    hid = conc @ params["W_h"].T + params["b_h"][None, :]
    out = conc @ params["W_o"].T + params["b_o"][None, :]
    return out, hid


def rnn_sequence_ref(x_seq, h0, params):
    outs, h = [], h0
    for t in range(x_seq.shape[0]):
        o, h = rnn_step_ref(x_seq[t:t + 1], h, params)
        outs.append(o)
    return jnp.concatenate(outs, axis=0), h


if __name__ == "__main__":
    HIDDEN = 128      # module default; lane-aligned
    T = 8             # short demo sequence

    key = jax.random.PRNGKey(0)
    kp, kx = jax.random.split(key, 2)

    params = init_params(kp, hidden=HIDDEN)
    pp = prep_params(params)                              # one-time weight repack
    x_seq = jax.random.normal(kx, (T,), jnp.float32)
    h0 = jnp.zeros((1, HIDDEN), jnp.float32)              # module init_hidden()

    # fused-sequence kernel
    outs, h_final = rnn_forward_sequence(x_seq, h0, pp)
    outs, h_final = jax.block_until_ready((outs, h_final))

    outs_ref, h_final_ref = rnn_sequence_ref(x_seq, h0, params)
    assert outs.shape == (T, 1) and h_final.shape == (1, HIDDEN)
    assert jnp.allclose(outs, outs_ref, atol=1e-4, rtol=1e-4)
    assert jnp.allclose(h_final, h_final_ref, atol=1e-4, rtol=1e-4)

    # single-step API (exact module forward signature semantics)
    out1, h1 = rnn_forward(x_seq[:1], h0, pp)
    out1, h1 = jax.block_until_ready((out1, h1))
    out1_ref, h1_ref = rnn_step_ref(x_seq[:1], h0, params)
    assert out1.shape == (1, 1) and h1.shape == (1, HIDDEN)
    assert jnp.allclose(out1, out1_ref, atol=1e-4, rtol=1e-4)
    assert jnp.allclose(h1, h1_ref, atol=1e-4, rtol=1e-4)

    print("KERNEL_OK")
</pallas_src>

<mosaic_0001>
module attributes {stable_mosaic.version = 11 : i64} {
  func.func @rnn_seq_kernel(%arg0: memref<8xf32, #tpu.memory_space<smem>>, %arg1: memref<2xf32, #tpu.memory_space<smem>>, %arg2: memref<1x128xf32, #tpu.memory_space<vmem>>, %arg3: memref<2x128xf32, #tpu.memory_space<vmem>>, %arg4: memref<128x256xf32, #tpu.memory_space<vmem>>, %arg5: memref<1x128xf32, #tpu.memory_space<vmem>>, %arg6: memref<1x128xf32, #tpu.memory_space<vmem>>) attributes {dimension_semantics = [], scalar_prefetch = 0 : i64, scratch_operands = 0 : i64, tpu.core_type = #tpu.core_type<tc>} {
    %cst = arith.constant 0.000000e+00 : f32
    %0 = vector.broadcast %cst : f32 to vector<1x128xf32>
    %c0 = arith.constant 0 : index
    %c0_0 = arith.constant 0 : index
    %1 = vector.load %arg5[%c0, %c0_0] : memref<1x128xf32, #tpu.memory_space<vmem>>, vector<1x128xf32>
    tpu.vector_store %arg5[%c0, %c0_0], %0 {strides = array<i32>} : memref<1x128xf32, #tpu.memory_space<vmem>>, vector<1x128xf32>,
    %c0_1 = arith.constant 0 : index
    %c0_2 = arith.constant 0 : index
    %2 = vector.load %arg3[%c0_1, %c0_2] : memref<2x128xf32, #tpu.memory_space<vmem>>, vector<1x128xf32>
    %c1 = arith.constant 1 : index
    %c0_3 = arith.constant 0 : index
    %3 = vector.load %arg3[%c1, %c0_3] : memref<2x128xf32, #tpu.memory_space<vmem>>, vector<1x128xf32>
    %c0_4 = arith.constant 0 : index
    %4 = memref.load %arg1[%c0_4] : memref<2xf32, #tpu.memory_space<smem>>
    %c1_5 = arith.constant 1 : index
    %5 = memref.load %arg1[%c1_5] : memref<2xf32, #tpu.memory_space<smem>>
    %6 = tpu.iota {dimensions = array<i32: 1>} : vector<1x128xi32>
    %c0_6 = arith.constant 0 : index
    %c0_7 = arith.constant 0 : index
    %7 = vector.load %arg2[%c0_6, %c0_7] : memref<1x128xf32, #tpu.memory_space<vmem>>, vector<1x128xf32>
    %c0_i32 = arith.constant 0 : i32
    %8 = arith.index_cast %c0_i32 : i32 to index
    %9 = memref.load %arg0[%8] : memref<8xf32, #tpu.memory_space<smem>>
    %c0_8 = arith.constant 0 : index
    %c0_9 = arith.constant 0 : index
    %10 = vector.load %arg4[%c0_8, %c0_9] : memref<128x256xf32, #tpu.memory_space<vmem>>, vector<128x256xf32>
    %cst_10 = arith.constant dense<0.000000e+00> : vector<1x256xf32>
    %11 = tpu.matmul %7, %10, %cst_10 {dimension_numbers = #tpu.dot_dimension_numbers<[1], [0], [0], [1], [0, 0, 1, 1], [], []>} : vector<1x128xf32>, vector<128x256xf32>, vector<1x256xf32> -> vector<1x256xf32>
    %12 = vector.broadcast %9 : f32 to vector<1x128xf32>
    %13 = arith.mulf %12, %2 : vector<1x128xf32>
    %14 = vector.extract_strided_slice %11 {offsets = [0, 0], sizes = [1, 128], strides = [1, 1]} : vector<1x256xf32> to vector<1x128xf32>
    %15 = arith.addf %13, %14 : vector<1x128xf32>
    %16 = arith.addf %15, %3 : vector<1x128xf32>
    %17 = arith.mulf %9, %4 : f32
    %18 = vector.extract_strided_slice %11 {offsets = [0, 128], sizes = [1, 128], strides = [1, 1]} : vector<1x256xf32> to vector<1x128xf32>
    %19 = vector.broadcast %17 : f32 to vector<1x128xf32>
    %20 = arith.addf %19, %18 : vector<1x128xf32>
    %21 = vector.broadcast %5 : f32 to vector<1x128xf32>
    %22 = arith.addf %20, %21 : vector<1x128xf32>
    %c128_i32 = arith.constant 128 : i32
    %c0_i32_11 = arith.constant 0 : i32
    %23 = arith.cmpi eq, %c128_i32, %c0_i32_11 : i32
    %c1_i32 = arith.constant 1 : i32
    %24 = arith.select %23, %c1_i32, %c128_i32 : i32
    %25 = arith.remsi %c0_i32, %24 : i32
    %c0_i32_12 = arith.constant 0 : i32
    %26 = arith.cmpi ne, %25, %c0_i32_12 : i32
    %c0_i32_13 = arith.constant 0 : i32
    %27 = arith.cmpi slt, %25, %c0_i32_13 : i32
    %c0_i32_14 = arith.constant 0 : i32
    %28 = arith.cmpi slt, %24, %c0_i32_14 : i32
    %29 = arith.xori %27, %28 : i1
    %30 = arith.andi %29, %26 : i1
    %31 = arith.addi %25, %24 : i32
    %32 = arith.select %30, %31, %25 : i32
    %33 = vector.broadcast %32 : i32 to vector<1x128xi32>
    %34 = arith.cmpi eq, %6, %33 : vector<1x128xi32>
    %c0_15 = arith.constant 0 : index
    %c0_16 = arith.constant 0 : index
    %35 = vector.load %arg5[%c0_15, %c0_16] : memref<1x128xf32, #tpu.memory_space<vmem>>, vector<1x128xf32>
    %36 = arith.select %34, %22, %35 : vector<1x128xi1>, vector<1x128xf32>
    %c0_17 = arith.constant 0 : index
    %c0_18 = arith.constant 0 : index
    %37 = vector.load %arg5[%c0_17, %c0_18] : memref<1x128xf32, #tpu.memory_space<vmem>>, vector<1x128xf32>
    tpu.vector_store %arg5[%c0_17, %c0_18], %36 {strides = array<i32>} : memref<1x128xf32, #tpu.memory_space<vmem>>, vector<1x128xf32>,
    %c1_i32_19 = arith.constant 1 : i32
    %38 = arith.index_cast %c1_i32_19 : i32 to index
    %39 = memref.load %arg0[%38] : memref<8xf32, #tpu.memory_space<smem>>
    %c0_20 = arith.constant 0 : index
    %c0_21 = arith.constant 0 : index
    %40 = vector.load %arg4[%c0_20, %c0_21] : memref<128x256xf32, #tpu.memory_space<vmem>>, vector<128x256xf32>
    %cst_22 = arith.constant dense<0.000000e+00> : vector<1x256xf32>
    %41 = tpu.matmul %16, %40, %cst_22 {dimension_numbers = #tpu.dot_dimension_numbers<[1], [0], [0], [1], [0, 0, 1, 1], [], []>} : vector<1x128xf32>, vector<128x256xf32>, vector<1x256xf32> -> vector<1x256xf32>
    %42 = vector.broadcast %39 : f32 to vector<1x128xf32>
    %43 = arith.mulf %42, %2 : vector<1x128xf32>
    %44 = vector.extract_strided_slice %41 {offsets = [0, 0], sizes = [1, 128], strides = [1, 1]} : vector<1x256xf32> to vector<1x128xf32>
    %45 = arith.addf %43, %44 : vector<1x128xf32>
    %46 = arith.addf %45, %3 : vector<1x128xf32>
    %47 = arith.mulf %39, %4 : f32
    %48 = vector.extract_strided_slice %41 {offsets = [0, 128], sizes = [1, 128], strides = [1, 1]} : vector<1x256xf32> to vector<1x128xf32>
    %49 = vector.broadcast %47 : f32 to vector<1x128xf32>
    %50 = arith.addf %49, %48 : vector<1x128xf32>
    %51 = vector.broadcast %5 : f32 to vector<1x128xf32>
    %52 = arith.addf %50, %51 : vector<1x128xf32>
    %c128_i32_23 = arith.constant 128 : i32
    %c0_i32_24 = arith.constant 0 : i32
    %53 = arith.cmpi eq, %c128_i32_23, %c0_i32_24 : i32
    %c1_i32_25 = arith.constant 1 : i32
    %54 = arith.select %53, %c1_i32_25, %c128_i32_23 : i32
    %55 = arith.remsi %c1_i32_19, %54 : i32
    %c0_i32_26 = arith.constant 0 : i32
    %56 = arith.cmpi ne, %55, %c0_i32_26 : i32
    %c0_i32_27 = arith.constant 0 : i32
    %57 = arith.cmpi slt, %55, %c0_i32_27 : i32
    %c0_i32_28 = arith.constant 0 : i32
    %58 = arith.cmpi slt, %54, %c0_i32_28 : i32
    %59 = arith.xori %57, %58 : i1
    %60 = arith.andi %59, %56 : i1
    %61 = arith.addi %55, %54 : i32
    %62 = arith.select %60, %61, %55 : i32
    %63 = vector.broadcast %62 : i32 to vector<1x128xi32>
    %64 = arith.cmpi eq, %6, %63 : vector<1x128xi32>
    %c0_29 = arith.constant 0 : index
    %c0_30 = arith.constant 0 : index
    %65 = vector.load %arg5[%c0_29, %c0_30] : memref<1x128xf32, #tpu.memory_space<vmem>>, vector<1x128xf32>
    %66 = arith.select %64, %52, %65 : vector<1x128xi1>, vector<1x128xf32>
    %c0_31 = arith.constant 0 : index
    %c0_32 = arith.constant 0 : index
    %67 = vector.load %arg5[%c0_31, %c0_32] : memref<1x128xf32, #tpu.memory_space<vmem>>, vector<1x128xf32>
    tpu.vector_store %arg5[%c0_31, %c0_32], %66 {strides = array<i32>} : memref<1x128xf32, #tpu.memory_space<vmem>>, vector<1x128xf32>,
    %c2_i32 = arith.constant 2 : i32
    %68 = arith.index_cast %c2_i32 : i32 to index
    %69 = memref.load %arg0[%68] : memref<8xf32, #tpu.memory_space<smem>>
    %c0_33 = arith.constant 0 : index
    %c0_34 = arith.constant 0 : index
    %70 = vector.load %arg4[%c0_33, %c0_34] : memref<128x256xf32, #tpu.memory_space<vmem>>, vector<128x256xf32>
    %cst_35 = arith.constant dense<0.000000e+00> : vector<1x256xf32>
    %71 = tpu.matmul %46, %70, %cst_35 {dimension_numbers = #tpu.dot_dimension_numbers<[1], [0], [0], [1], [0, 0, 1, 1], [], []>} : vector<1x128xf32>, vector<128x256xf32>, vector<1x256xf32> -> vector<1x256xf32>
    %72 = vector.broadcast %69 : f32 to vector<1x128xf32>
    %73 = arith.mulf %72, %2 : vector<1x128xf32>
    %74 = vector.extract_strided_slice %71 {offsets = [0, 0], sizes = [1, 128], strides = [1, 1]} : vector<1x256xf32> to vector<1x128xf32>
    %75 = arith.addf %73, %74 : vector<1x128xf32>
    %76 = arith.addf %75, %3 : vector<1x128xf32>
    %77 = arith.mulf %69, %4 : f32
    %78 = vector.extract_strided_slice %71 {offsets = [0, 128], sizes = [1, 128], strides = [1, 1]} : vector<1x256xf32> to vector<1x128xf32>
    %79 = vector.broadcast %77 : f32 to vector<1x128xf32>
    %80 = arith.addf %79, %78 : vector<1x128xf32>
    %81 = vector.broadcast %5 : f32 to vector<1x128xf32>
    %82 = arith.addf %80, %81 : vector<1x128xf32>
    %c128_i32_36 = arith.constant 128 : i32
    %c0_i32_37 = arith.constant 0 : i32
    %83 = arith.cmpi eq, %c128_i32_36, %c0_i32_37 : i32
    %c1_i32_38 = arith.constant 1 : i32
    %84 = arith.select %83, %c1_i32_38, %c128_i32_36 : i32
    %85 = arith.remsi %c2_i32, %84 : i32
    %c0_i32_39 = arith.constant 0 : i32
    %86 = arith.cmpi ne, %85, %c0_i32_39 : i32
    %c0_i32_40 = arith.constant 0 : i32
    %87 = arith.cmpi slt, %85, %c0_i32_40 : i32
    %c0_i32_41 = arith.constant 0 : i32
    %88 = arith.cmpi slt, %84, %c0_i32_41 : i32
    %89 = arith.xori %87, %88 : i1
    %90 = arith.andi %89, %86 : i1
    %91 = arith.addi %85, %84 : i32
    %92 = arith.select %90, %91, %85 : i32
    %93 = vector.broadcast %92 : i32 to vector<1x128xi32>
    %94 = arith.cmpi eq, %6, %93 : vector<1x128xi32>
    %c0_42 = arith.constant 0 : index
    %c0_43 = arith.constant 0 : index
    %95 = vector.load %arg5[%c0_42, %c0_43] : memref<1x128xf32, #tpu.memory_space<vmem>>, vector<1x128xf32>
    %96 = arith.select %94, %82, %95 : vector<1x128xi1>, vector<1x128xf32>
    %c0_44 = arith.constant 0 : index
    %c0_45 = arith.constant 0 : index
    %97 = vector.load %arg5[%c0_44, %c0_45] : memref<1x128xf32, #tpu.memory_space<vmem>>, vector<1x128xf32>
    tpu.vector_store %arg5[%c0_44, %c0_45], %96 {strides = array<i32>} : memref<1x128xf32, #tpu.memory_space<vmem>>, vector<1x128xf32>,
    %c3_i32 = arith.constant 3 : i32
    %98 = arith.index_cast %c3_i32 : i32 to index
    %99 = memref.load %arg0[%98] : memref<8xf32, #tpu.memory_space<smem>>
    %c0_46 = arith.constant 0 : index
    %c0_47 = arith.constant 0 : index
    %100 = vector.load %arg4[%c0_46, %c0_47] : memref<128x256xf32, #tpu.memory_space<vmem>>, vector<128x256xf32>
    %cst_48 = arith.constant dense<0.000000e+00> : vector<1x256xf32>
    %101 = tpu.matmul %76, %100, %cst_48 {dimension_numbers = #tpu.dot_dimension_numbers<[1], [0], [0], [1], [0, 0, 1, 1], [], []>} : vector<1x128xf32>, vector<128x256xf32>, vector<1x256xf32> -> vector<1x256xf32>
    %102 = vector.broadcast %99 : f32 to vector<1x128xf32>
    %103 = arith.mulf %102, %2 : vector<1x128xf32>
    %104 = vector.extract_strided_slice %101 {offsets = [0, 0], sizes = [1, 128], strides = [1, 1]} : vector<1x256xf32> to vector<1x128xf32>
    %105 = arith.addf %103, %104 : vector<1x128xf32>
    %106 = arith.addf %105, %3 : vector<1x128xf32>
    %107 = arith.mulf %99, %4 : f32
    %108 = vector.extract_strided_slice %101 {offsets = [0, 128], sizes = [1, 128], strides = [1, 1]} : vector<1x256xf32> to vector<1x128xf32>
    %109 = vector.broadcast %107 : f32 to vector<1x128xf32>
    %110 = arith.addf %109, %108 : vector<1x128xf32>
    %111 = vector.broadcast %5 : f32 to vector<1x128xf32>
    %112 = arith.addf %110, %111 : vector<1x128xf32>
    %c128_i32_49 = arith.constant 128 : i32
    %c0_i32_50 = arith.constant 0 : i32
    %113 = arith.cmpi eq, %c128_i32_49, %c0_i32_50 : i32
    %c1_i32_51 = arith.constant 1 : i32
    %114 = arith.select %113, %c1_i32_51, %c128_i32_49 : i32
    %115 = arith.remsi %c3_i32, %114 : i32
    %c0_i32_52 = arith.constant 0 : i32
    %116 = arith.cmpi ne, %115, %c0_i32_52 : i32
    %c0_i32_53 = arith.constant 0 : i32
    %117 = arith.cmpi slt, %115, %c0_i32_53 : i32
    %c0_i32_54 = arith.constant 0 : i32
    %118 = arith.cmpi slt, %114, %c0_i32_54 : i32
    %119 = arith.xori %117, %118 : i1
    %120 = arith.andi %119, %116 : i1
    %121 = arith.addi %115, %114 : i32
    %122 = arith.select %120, %121, %115 : i32
    %123 = vector.broadcast %122 : i32 to vector<1x128xi32>
    %124 = arith.cmpi eq, %6, %123 : vector<1x128xi32>
    %c0_55 = arith.constant 0 : index
    %c0_56 = arith.constant 0 : index
    %125 = vector.load %arg5[%c0_55, %c0_56] : memref<1x128xf32, #tpu.memory_space<vmem>>, vector<1x128xf32>
    %126 = arith.select %124, %112, %125 : vector<1x128xi1>, vector<1x128xf32>
    %c0_57 = arith.constant 0 : index
    %c0_58 = arith.constant 0 : index
    %127 = vector.load %arg5[%c0_57, %c0_58] : memref<1x128xf32, #tpu.memory_space<vmem>>, vector<1x128xf32>
    tpu.vector_store %arg5[%c0_57, %c0_58], %126 {strides = array<i32>} : memref<1x128xf32, #tpu.memory_space<vmem>>, vector<1x128xf32>,
    %c4_i32 = arith.constant 4 : i32
    %128 = arith.index_cast %c4_i32 : i32 to index
    %129 = memref.load %arg0[%128] : memref<8xf32, #tpu.memory_space<smem>>
    %c0_59 = arith.constant 0 : index
    %c0_60 = arith.constant 0 : index
    %130 = vector.load %arg4[%c0_59, %c0_60] : memref<128x256xf32, #tpu.memory_space<vmem>>, vector<128x256xf32>
    %cst_61 = arith.constant dense<0.000000e+00> : vector<1x256xf32>
    %131 = tpu.matmul %106, %130, %cst_61 {dimension_numbers = #tpu.dot_dimension_numbers<[1], [0], [0], [1], [0, 0, 1, 1], [], []>} : vector<1x128xf32>, vector<128x256xf32>, vector<1x256xf32> -> vector<1x256xf32>
    %132 = vector.broadcast %129 : f32 to vector<1x128xf32>
    %133 = arith.mulf %132, %2 : vector<1x128xf32>
    %134 = vector.extract_strided_slice %131 {offsets = [0, 0], sizes = [1, 128], strides = [1, 1]} : vector<1x256xf32> to vector<1x128xf32>
    %135 = arith.addf %133, %134 : vector<1x128xf32>
    %136 = arith.addf %135, %3 : vector<1x128xf32>
    %137 = arith.mulf %129, %4 : f32
    %138 = vector.extract_strided_slice %131 {offsets = [0, 128], sizes = [1, 128], strides = [1, 1]} : vector<1x256xf32> to vector<1x128xf32>
    %139 = vector.broadcast %137 : f32 to vector<1x128xf32>
    %140 = arith.addf %139, %138 : vector<1x128xf32>
    %141 = vector.broadcast %5 : f32 to vector<1x128xf32>
    %142 = arith.addf %140, %141 : vector<1x128xf32>
    %c128_i32_62 = arith.constant 128 : i32
    %c0_i32_63 = arith.constant 0 : i32
    %143 = arith.cmpi eq, %c128_i32_62, %c0_i32_63 : i32
    %c1_i32_64 = arith.constant 1 : i32
    %144 = arith.select %143, %c1_i32_64, %c128_i32_62 : i32
    %145 = arith.remsi %c4_i32, %144 : i32
    %c0_i32_65 = arith.constant 0 : i32
    %146 = arith.cmpi ne, %145, %c0_i32_65 : i32
    %c0_i32_66 = arith.constant 0 : i32
    %147 = arith.cmpi slt, %145, %c0_i32_66 : i32
    %c0_i32_67 = arith.constant 0 : i32
    %148 = arith.cmpi slt, %144, %c0_i32_67 : i32
    %149 = arith.xori %147, %148 : i1
    %150 = arith.andi %149, %146 : i1
    %151 = arith.addi %145, %144 : i32
    %152 = arith.select %150, %151, %145 : i32
    %153 = vector.broadcast %152 : i32 to vector<1x128xi32>
    %154 = arith.cmpi eq, %6, %153 : vector<1x128xi32>
    %c0_68 = arith.constant 0 : index
    %c0_69 = arith.constant 0 : index
    %155 = vector.load %arg5[%c0_68, %c0_69] : memref<1x128xf32, #tpu.memory_space<vmem>>, vector<1x128xf32>
    %156 = arith.select %154, %142, %155 : vector<1x128xi1>, vector<1x128xf32>
    %c0_70 = arith.constant 0 : index
    %c0_71 = arith.constant 0 : index
    %157 = vector.load %arg5[%c0_70, %c0_71] : memref<1x128xf32, #tpu.memory_space<vmem>>, vector<1x128xf32>
    tpu.vector_store %arg5[%c0_70, %c0_71], %156 {strides = array<i32>} : memref<1x128xf32, #tpu.memory_space<vmem>>, vector<1x128xf32>,
    %c5_i32 = arith.constant 5 : i32
    %158 = arith.index_cast %c5_i32 : i32 to index
    %159 = memref.load %arg0[%158] : memref<8xf32, #tpu.memory_space<smem>>
    %c0_72 = arith.constant 0 : index
    %c0_73 = arith.constant 0 : index
    %160 = vector.load %arg4[%c0_72, %c0_73] : memref<128x256xf32, #tpu.memory_space<vmem>>, vector<128x256xf32>
    %cst_74 = arith.constant dense<0.000000e+00> : vector<1x256xf32>
    %161 = tpu.matmul %136, %160, %cst_74 {dimension_numbers = #tpu.dot_dimension_numbers<[1], [0], [0], [1], [0, 0, 1, 1], [], []>} : vector<1x128xf32>, vector<128x256xf32>, vector<1x256xf32> -> vector<1x256xf32>
    %162 = vector.broadcast %159 : f32 to vector<1x128xf32>
    %163 = arith.mulf %162, %2 : vector<1x128xf32>
    %164 = vector.extract_strided_slice %161 {offsets = [0, 0], sizes = [1, 128], strides = [1, 1]} : vector<1x256xf32> to vector<1x128xf32>
    %165 = arith.addf %163, %164 : vector<1x128xf32>
    %166 = arith.addf %165, %3 : vector<1x128xf32>
    %167 = arith.mulf %159, %4 : f32
    %168 = vector.extract_strided_slice %161 {offsets = [0, 128], sizes = [1, 128], strides = [1, 1]} : vector<1x256xf32> to vector<1x128xf32>
    %169 = vector.broadcast %167 : f32 to vector<1x128xf32>
    %170 = arith.addf %169, %168 : vector<1x128xf32>
    %171 = vector.broadcast %5 : f32 to vector<1x128xf32>
    %172 = arith.addf %170, %171 : vector<1x128xf32>
    %c128_i32_75 = arith.constant 128 : i32
    %c0_i32_76 = arith.constant 0 : i32
    %173 = arith.cmpi eq, %c128_i32_75, %c0_i32_76 : i32
    %c1_i32_77 = arith.constant 1 : i32
    %174 = arith.select %173, %c1_i32_77, %c128_i32_75 : i32
    %175 = arith.remsi %c5_i32, %174 : i32
    %c0_i32_78 = arith.constant 0 : i32
    %176 = arith.cmpi ne, %175, %c0_i32_78 : i32
    %c0_i32_79 = arith.constant 0 : i32
    %177 = arith.cmpi slt, %175, %c0_i32_79 : i32
    %c0_i32_80 = arith.constant 0 : i32
    %178 = arith.cmpi slt, %174, %c0_i32_80 : i32
    %179 = arith.xori %177, %178 : i1
    %180 = arith.andi %179, %176 : i1
    %181 = arith.addi %175, %174 : i32
    %182 = arith.select %180, %181, %175 : i32
    %183 = vector.broadcast %182 : i32 to vector<1x128xi32>
    %184 = arith.cmpi eq, %6, %183 : vector<1x128xi32>
    %c0_81 = arith.constant 0 : index
    %c0_82 = arith.constant 0 : index
    %185 = vector.load %arg5[%c0_81, %c0_82] : memref<1x128xf32, #tpu.memory_space<vmem>>, vector<1x128xf32>
    %186 = arith.select %184, %172, %185 : vector<1x128xi1>, vector<1x128xf32>
    %c0_83 = arith.constant 0 : index
    %c0_84 = arith.constant 0 : index
    %187 = vector.load %arg5[%c0_83, %c0_84] : memref<1x128xf32, #tpu.memory_space<vmem>>, vector<1x128xf32>
    tpu.vector_store %arg5[%c0_83, %c0_84], %186 {strides = array<i32>} : memref<1x128xf32, #tpu.memory_space<vmem>>, vector<1x128xf32>,
    %c6_i32 = arith.constant 6 : i32
    %188 = arith.index_cast %c6_i32 : i32 to index
    %189 = memref.load %arg0[%188] : memref<8xf32, #tpu.memory_space<smem>>
    %c0_85 = arith.constant 0 : index
    %c0_86 = arith.constant 0 : index
    %190 = vector.load %arg4[%c0_85, %c0_86] : memref<128x256xf32, #tpu.memory_space<vmem>>, vector<128x256xf32>
    %cst_87 = arith.constant dense<0.000000e+00> : vector<1x256xf32>
    %191 = tpu.matmul %166, %190, %cst_87 {dimension_numbers = #tpu.dot_dimension_numbers<[1], [0], [0], [1], [0, 0, 1, 1], [], []>} : vector<1x128xf32>, vector<128x256xf32>, vector<1x256xf32> -> vector<1x256xf32>
    %192 = vector.broadcast %189 : f32 to vector<1x128xf32>
    %193 = arith.mulf %192, %2 : vector<1x128xf32>
    %194 = vector.extract_strided_slice %191 {offsets = [0, 0], sizes = [1, 128], strides = [1, 1]} : vector<1x256xf32> to vector<1x128xf32>
    %195 = arith.addf %193, %194 : vector<1x128xf32>
    %196 = arith.addf %195, %3 : vector<1x128xf32>
    %197 = arith.mulf %189, %4 : f32
    %198 = vector.extract_strided_slice %191 {offsets = [0, 128], sizes = [1, 128], strides = [1, 1]} : vector<1x256xf32> to vector<1x128xf32>
    %199 = vector.broadcast %197 : f32 to vector<1x128xf32>
    %200 = arith.addf %199, %198 : vector<1x128xf32>
    %201 = vector.broadcast %5 : f32 to vector<1x128xf32>
    %202 = arith.addf %200, %201 : vector<1x128xf32>
    %c128_i32_88 = arith.constant 128 : i32
    %c0_i32_89 = arith.constant 0 : i32
    %203 = arith.cmpi eq, %c128_i32_88, %c0_i32_89 : i32
    %c1_i32_90 = arith.constant 1 : i32
    %204 = arith.select %203, %c1_i32_90, %c128_i32_88 : i32
    %205 = arith.remsi %c6_i32, %204 : i32
    %c0_i32_91 = arith.constant 0 : i32
    %206 = arith.cmpi ne, %205, %c0_i32_91 : i32
    %c0_i32_92 = arith.constant 0 : i32
    %207 = arith.cmpi slt, %205, %c0_i32_92 : i32
    %c0_i32_93 = arith.constant 0 : i32
    %208 = arith.cmpi slt, %204, %c0_i32_93 : i32
    %209 = arith.xori %207, %208 : i1
    %210 = arith.andi %209, %206 : i1
    %211 = arith.addi %205, %204 : i32
    %212 = arith.select %210, %211, %205 : i32
    %213 = vector.broadcast %212 : i32 to vector<1x128xi32>
    %214 = arith.cmpi eq, %6, %213 : vector<1x128xi32>
    %c0_94 = arith.constant 0 : index
    %c0_95 = arith.constant 0 : index
    %215 = vector.load %arg5[%c0_94, %c0_95] : memref<1x128xf32, #tpu.memory_space<vmem>>, vector<1x128xf32>
    %216 = arith.select %214, %202, %215 : vector<1x128xi1>, vector<1x128xf32>
    %c0_96 = arith.constant 0 : index
    %c0_97 = arith.constant 0 : index
    %217 = vector.load %arg5[%c0_96, %c0_97] : memref<1x128xf32, #tpu.memory_space<vmem>>, vector<1x128xf32>
    tpu.vector_store %arg5[%c0_96, %c0_97], %216 {strides = array<i32>} : memref<1x128xf32, #tpu.memory_space<vmem>>, vector<1x128xf32>,
    %c7_i32 = arith.constant 7 : i32
    %218 = arith.index_cast %c7_i32 : i32 to index
    %219 = memref.load %arg0[%218] : memref<8xf32, #tpu.memory_space<smem>>
    %c0_98 = arith.constant 0 : index
    %c0_99 = arith.constant 0 : index
    %220 = vector.load %arg4[%c0_98, %c0_99] : memref<128x256xf32, #tpu.memory_space<vmem>>, vector<128x256xf32>
    %cst_100 = arith.constant dense<0.000000e+00> : vector<1x256xf32>
    %221 = tpu.matmul %196, %220, %cst_100 {dimension_numbers = #tpu.dot_dimension_numbers<[1], [0], [0], [1], [0, 0, 1, 1], [], []>} : vector<1x128xf32>, vector<128x256xf32>, vector<1x256xf32> -> vector<1x256xf32>
    %222 = vector.broadcast %219 : f32 to vector<1x128xf32>
    %223 = arith.mulf %222, %2 : vector<1x128xf32>
    %224 = vector.extract_strided_slice %221 {offsets = [0, 0], sizes = [1, 128], strides = [1, 1]} : vector<1x256xf32> to vector<1x128xf32>
    %225 = arith.addf %223, %224 : vector<1x128xf32>
    %226 = arith.addf %225, %3 : vector<1x128xf32>
    %227 = arith.mulf %219, %4 : f32
    %228 = vector.extract_strided_slice %221 {offsets = [0, 128], sizes = [1, 128], strides = [1, 1]} : vector<1x256xf32> to vector<1x128xf32>
    %229 = vector.broadcast %227 : f32 to vector<1x128xf32>
    %230 = arith.addf %229, %228 : vector<1x128xf32>
    %231 = vector.broadcast %5 : f32 to vector<1x128xf32>
    %232 = arith.addf %230, %231 : vector<1x128xf32>
    %c128_i32_101 = arith.constant 128 : i32
    %c0_i32_102 = arith.constant 0 : i32
    %233 = arith.cmpi eq, %c128_i32_101, %c0_i32_102 : i32
    %c1_i32_103 = arith.constant 1 : i32
    %234 = arith.select %233, %c1_i32_103, %c128_i32_101 : i32
    %235 = arith.remsi %c7_i32, %234 : i32
    %c0_i32_104 = arith.constant 0 : i32
    %236 = arith.cmpi ne, %235, %c0_i32_104 : i32
    %c0_i32_105 = arith.constant 0 : i32
    %237 = arith.cmpi slt, %235, %c0_i32_105 : i32
    %c0_i32_106 = arith.constant 0 : i32
    %238 = arith.cmpi slt, %234, %c0_i32_106 : i32
    %239 = arith.xori %237, %238 : i1
    %240 = arith.andi %239, %236 : i1
    %241 = arith.addi %235, %234 : i32
    %242 = arith.select %240, %241, %235 : i32
    %243 = vector.broadcast %242 : i32 to vector<1x128xi32>
    %244 = arith.cmpi eq, %6, %243 : vector<1x128xi32>
    %c0_107 = arith.constant 0 : index
    %c0_108 = arith.constant 0 : index
    %245 = vector.load %arg5[%c0_107, %c0_108] : memref<1x128xf32, #tpu.memory_space<vmem>>, vector<1x128xf32>
    %246 = arith.select %244, %232, %245 : vector<1x128xi1>, vector<1x128xf32>
    %c0_109 = arith.constant 0 : index
    %c0_110 = arith.constant 0 : index
    %247 = vector.load %arg5[%c0_109, %c0_110] : memref<1x128xf32, #tpu.memory_space<vmem>>, vector<1x128xf32>
    tpu.vector_store %arg5[%c0_109, %c0_110], %246 {strides = array<i32>} : memref<1x128xf32, #tpu.memory_space<vmem>>, vector<1x128xf32>,
    %c8_i32 = arith.constant 8 : i32
    %c0_111 = arith.constant 0 : index
    %c0_112 = arith.constant 0 : index
    %248 = vector.load %arg6[%c0_111, %c0_112] : memref<1x128xf32, #tpu.memory_space<vmem>>, vector<1x128xf32>
    tpu.vector_store %arg6[%c0_111, %c0_112], %226 {strides = array<i32>} : memref<1x128xf32, #tpu.memory_space<vmem>>, vector<1x128xf32>,
    return
  }
}

</mosaic_0001>

<llo_original>
// kernel: tpu_custom_call.1
$region0: #{tpu_custom_call.1}
  #allocation0 [shape = 'u32[]', space=smem, size = 0x4, offset = 0x4, fixed_abs, tag = 'smem constant byte address 0x4 - core index']
  #allocation1 [shape = 'u32[144,128]{1,0:T(1,128)}', space=vmem, size = 0x12000, scoped, tag = 'internal scratch']
  %s0 = inlined_call_operand.hbm [shape: f32[8], index: 0, kind: input, shape index: {}]
  %s1 = inlined_call_operand.vmem [shape: f32[2], index: 1, kind: input, shape index: {}]
  %s2 = inlined_call_operand.vmem [shape: f32[1,128], index: 2, kind: input, shape index: {}]
  %s3 = inlined_call_operand.vmem [shape: f32[2,128], index: 3, kind: input, shape index: {}]
  %s4 = inlined_call_operand.hbm [shape: f32[128,256], index: 4, kind: input, shape index: {}]
  %s5 = inlined_call_operand.hbm [shape: f32[1,128], index: 5, kind: output, shape index: {0}]
  %s6 = inlined_call_operand.hbm [shape: f32[1,128], index: 6, kind: output, shape index: {1}]
  %7 = xla_tuple %s5, %s6
  %s8 = sld [smem:[#allocation0]]
  $region50: #{tpu_custom_call.1} parent=0
    _
  %s10 = ssub.s32 1, %s8
  %s11 = scalar_select 0, %s10, %s8
  $region1: #{tpu_custom_call.1} parent=0
    #allocation2 [shape = 'u8[512]{0}', space=smem, size = 0x200, scoped, tag = 'input window, operand 0, single buffered']
    #allocation3 [shape = 's32[1]{0}', space=sflag, size = 0x4, scoped, tag = 'scoped memory for tpu_custom_call.1']
    #allocation4 [shape = 's32[1]{0}', space=sflag, size = 0x4, scoped, tag = 'scoped memory for tpu_custom_call.1']
    #allocation5 [shape = 's32[1]{0}', space=sflag, size = 0x4, scoped, tag = 'scoped memory for tpu_custom_call.1']
    #allocation6 [shape = 's32[1]{0}', space=sflag, size = 0x4, scoped, tag = 'scoped memory for tpu_custom_call.1']
    #allocation7 [shape = 'u8[512]{0}', space=smem, size = 0x200, scoped, tag = 'input window, operand 1, single buffered']
    #allocation8 [shape = 'u8[131072]{0}', space=vmem, size = 0x20000, scoped, tag = 'input window, operand 4, single buffered']
    #allocation9 [shape = 'u8[512]{0}', space=vmem, size = 0x400, scoped, tag = 'output window, operand 0, single buffered']
    #allocation10 [shape = 'u8[512]{0}', space=vmem, size = 0x400, scoped, tag = 'output window, operand 1, single buffered']
    #allocation11 [shape = 's32[1]{0}', space=sflag, size = 0x4, scoped, tag = 'scoped memory for tpu_custom_call.1']
    %12 = vsyncpa [#allocation5], 0
    %13 = vsyncpa [#allocation6], 0
    %14 = vsyncpa [#allocation3], 0
    %15 = vsyncpa [#allocation4], 0
    %16 = vsyncpa [#allocation11], 0
    // Predicated region
    $region2: #{tpu_custom_call.1} parent=1 // pred_check
      _
    $region3: #{tpu_custom_call.1} parent=1 // pred_check_branch
      %18 = sbr.rel (0) target = $region5
    $region4: #{tpu_custom_call.1} parent=1 // pred_region
      %s20 = ssub.s32 16, 16
      %21 = vsyncadd [#allocation5], %s20
      %24 = dma.hbm_to_smem %s0, 16, [#allocation2], [#allocation5]
    $region5: #{tpu_custom_call.1} parent=1 // pred_fallthru
      _
    // Predicated region
    $region6: #{tpu_custom_call.1} parent=1 // pred_check
      _
    $region7: #{tpu_custom_call.1} parent=1 // pred_check_branch
      %26 = sbr.rel (0) target = $region9
    $region8: #{tpu_custom_call.1} parent=1 // pred_region
      %s28 = ssub.s32 16, 16
      %29 = vsyncadd [#allocation6], %s28
      %s31 = sshll.u32 %s1, 4
      %s32 = int_to_ptr.vmem [resolvable:$true] %s31
      %34 = dma.vmem_to_smem %s32, 16, [#allocation7], [#allocation6]
    $region9: #{tpu_custom_call.1} parent=1 // pred_fallthru
      _
    // Predicated region
    $region10: #{tpu_custom_call.1} parent=1 // pred_check
      _
    $region11: #{tpu_custom_call.1} parent=1 // pred_check_branch
      %36 = sbr.rel (0) target = $region13
    $region12: #{tpu_custom_call.1} parent=1 // pred_region
      _
    $region13: #{tpu_custom_call.1} parent=1 // pred_fallthru
      _
    // Predicated region
    $region14: #{tpu_custom_call.1} parent=1 // pred_check
      _
    $region15: #{tpu_custom_call.1} parent=1 // pred_check_branch
      %38 = sbr.rel (0) target = $region17
    $region16: #{tpu_custom_call.1} parent=1 // pred_region
      _
    $region17: #{tpu_custom_call.1} parent=1 // pred_fallthru
      _
    // Predicated region
    $region18: #{tpu_custom_call.1} parent=1 // pred_check
      _
    $region19: #{tpu_custom_call.1} parent=1 // pred_check_branch
      %40 = sbr.rel (0) target = $region21
    $region20: #{tpu_custom_call.1} parent=1 // pred_region
      %s42 = ssub.s32 4096, 4096
      %43 = vsyncadd [#allocation3], %s42
      %s44 = sshll.u32 [#allocation8], 4
      %s45 = int_to_ptr.vmem [resolvable:$true] %s44
      %50 = dma.hbm_to_vmem [thread:$0]  %s4, 4096, %s45, [#allocation3], 256, 256, 16
    $region21: #{tpu_custom_call.1} parent=1 // pred_fallthru
      _
    // Predicated region
    $region22: #{tpu_custom_call.1} parent=1 // pred_check
      _
    $region23: #{tpu_custom_call.1} parent=1 // pred_check_branch
      %52 = sbr.rel (0) target = $region25
    $region24: #{tpu_custom_call.1} parent=1 // pred_region
      %53 = dma.done [#allocation5], 16
    $region25: #{tpu_custom_call.1} parent=1 // pred_fallthru
      _
    // Predicated region
    $region26: #{tpu_custom_call.1} parent=1 // pred_check
      _
    $region27: #{tpu_custom_call.1} parent=1 // pred_check_branch
      %55 = sbr.rel (0) target = $region29
    $region28: #{tpu_custom_call.1} parent=1 // pred_region
      %56 = dma.done [#allocation6], 16
    $region29: #{tpu_custom_call.1} parent=1 // pred_fallthru
      _
    // Predicated region
    $region30: #{tpu_custom_call.1} parent=1 // pred_check
      _
    $region31: #{tpu_custom_call.1} parent=1 // pred_check_branch
      %58 = sbr.rel (0) target = $region33
    $region32: #{tpu_custom_call.1} parent=1 // pred_region
      %59 = dma.done [#allocation3], 4096
    $region33: #{tpu_custom_call.1} parent=1 // pred_fallthru
      _
    %60 = sfence
    %61 = vst [vmem:[#allocation9] sm:$0x1] 0.0
    %v62 = vld [vmem:[%s3] sm:$0x1]
    %v63 = vld [vmem:[%s3 + $0x1] sm:$0x1]
    %s64 = sld [smem:[#allocation7]]
    %s65 = sld [smem:[#allocation7 + $0x1]]
    %v66 = vlaneseq
    %v67 = vand.u32 %v66, 127
    %v68 = vld [vmem:[%s2] sm:$0x1]
    %s69 = sld [smem:[#allocation2]]
    %v70 = vld [vmem:[#allocation8] sm:$0xff]
    %v71 = vld [vmem:[#allocation8 + $0x8] sm:$0xff]
    %v72 = vld [vmem:[#allocation8 + $0x10] sm:$0xff]
    %v73 = vld [vmem:[#allocation8 + $0x18] sm:$0xff]
    %v74 = vld [vmem:[#allocation8 + $0x20] sm:$0xff]
    %v75 = vld [vmem:[#allocation8 + $0x28] sm:$0xff]
    %v76 = vld [vmem:[#allocation8 + $0x30] sm:$0xff]
    %v77 = vld [vmem:[#allocation8 + $0x38] sm:$0xff]
    %v78 = vld [vmem:[#allocation8 + $0x40] sm:$0xff]
    %v79 = vld [vmem:[#allocation8 + $0x48] sm:$0xff]
    %v80 = vld [vmem:[#allocation8 + $0x50] sm:$0xff]
    %v81 = vld [vmem:[#allocation8 + $0x58] sm:$0xff]
    %v82 = vld [vmem:[#allocation8 + $0x60] sm:$0xff]
    %v83 = vld [vmem:[#allocation8 + $0x68] sm:$0xff]
    %v84 = vld [vmem:[#allocation8 + $0x70] sm:$0xff]
    %v85 = vld [vmem:[#allocation8 + $0x78] sm:$0xff]
    %v86 = vld [vmem:[#allocation8 + $0x80] sm:$0xff]
    %v87 = vld [vmem:[#allocation8 + $0x88] sm:$0xff]
    %v88 = vld [vmem:[#allocation8 + $0x90] sm:$0xff]
    %v89 = vld [vmem:[#allocation8 + $0x98] sm:$0xff]
    %v90 = vld [vmem:[#allocation8 + $0xa0] sm:$0xff]
    %v91 = vld [vmem:[#allocation8 + $0xa8] sm:$0xff]
    %v92 = vld [vmem:[#allocation8 + $0xb0] sm:$0xff]
    %v93 = vld [vmem:[#allocation8 + $0xb8] sm:$0xff]
    %v94 = vld [vmem:[#allocation8 + $0xc0] sm:$0xff]
    %v95 = vld [vmem:[#allocation8 + $0xc8] sm:$0xff]
    %v96 = vld [vmem:[#allocation8 + $0xd0] sm:$0xff]
    %v97 = vld [vmem:[#allocation8 + $0xd8] sm:$0xff]
    %v98 = vld [vmem:[#allocation8 + $0xe0] sm:$0xff]
    %v99 = vld [vmem:[#allocation8 + $0xe8] sm:$0xff]
    %v100 = vld [vmem:[#allocation8 + $0xf0] sm:$0xff]
    %v101 = vld [vmem:[#allocation8 + $0xf8] sm:$0xff]
    %102 = vmatprep.subr.mxu0 %v71
    %103 = vmatpush1.msra.mxu0 %v70
    %104 = vmatprep.subr.mxu0 %v73
    %105 = vmatpush1.msra.mxu0 %v72
    %106 = vmatprep.subr.mxu0 %v75
    %107 = vmatpush1.msra.mxu0 %v74
    %108 = vmatprep.subr.mxu0 %v77
    %109 = vmatpush1.msra.mxu0 %v76
    %110 = vmatprep.subr.mxu0 %v79
    %111 = vmatpush1.msra.mxu0 %v78
    %112 = vmatprep.subr.mxu0 %v81
    %113 = vmatpush1.msra.mxu0 %v80
    %114 = vmatprep.subr.mxu0 %v83
    %115 = vmatpush1.msra.mxu0 %v82
    %116 = vmatprep.subr.mxu0 %v85
    %117 = vmatpush1.msra.mxu0 %v84
    %118 = vmatprep.subr.mxu0 %v87
    %119 = vmatpush1.msra.mxu0 %v86
    %120 = vmatprep.subr.mxu0 %v89
    %121 = vmatpush1.msra.mxu0 %v88
    %122 = vmatprep.subr.mxu0 %v91
    %123 = vmatpush1.msra.mxu0 %v90
    %124 = vmatprep.subr.mxu0 %v93
    %125 = vmatpush1.msra.mxu0 %v92
    %126 = vmatprep.subr.mxu0 %v95
    %127 = vmatpush1.msra.mxu0 %v94
    %128 = vmatprep.subr.mxu0 %v97
    %129 = vmatpush1.msra.mxu0 %v96
    %130 = vmatprep.subr.mxu0 %v99
    %131 = vmatpush1.msra.mxu0 %v98
    %132 = vmatprep.subr.mxu0 %v101
    %133 = vmatpush1.msra.mxu0 %v100
    %134 = vmatprep.subr.mxu0 0.0
    %135 = vmatpush1.msra.mxu0 0.0
    %136 = vmatprep.subr.mxu0 0.0
    %137 = vmatpush1.msra.mxu0 0.0
    %138 = vmatprep.subr.mxu0 0.0
    %139 = vmatpush1.msra.mxu0 0.0
    %140 = vmatprep.subr.mxu0 0.0
    %141 = vmatpush1.msra.mxu0 0.0
    %142 = vmatprep.subr.mxu0 0.0
    %143 = vmatpush1.msra.mxu0 0.0
    %144 = vmatprep.subr.mxu0 0.0
    %145 = vmatpush1.msra.mxu0 0.0
    %146 = vmatprep.subr.mxu0 0.0
    %147 = vmatpush1.msra.mxu0 0.0
    %148 = vmatprep.subr.mxu0 0.0
    %149 = vmatpush1.msra.mxu0 0.0
    %150 = vmatprep.subr.mxu0 0.0
    %151 = vmatpush1.msra.mxu0 0.0
    %152 = vmatprep.subr.mxu0 0.0
    %153 = vmatpush1.msra.mxu0 0.0
    %154 = vmatprep.subr.mxu0 0.0
    %155 = vmatpush1.msra.mxu0 0.0
    %156 = vmatprep.subr.mxu0 0.0
    %157 = vmatpush1.msra.mxu0 0.0
    %158 = vmatprep.subr.mxu0 0.0
    %159 = vmatpush1.msra.mxu0 0.0
    %160 = vmatprep.subr.mxu0 0.0
    %161 = vmatpush1.msra.mxu0 0.0
    %162 = vmatprep.subr.mxu0 0.0
    %163 = vmatpush1.msra.mxu0 0.0
    %164 = vmatprep.subr.mxu0 0.0
    %165 = vmatpush1.msra.mxu0 0.0
    %166 = vmatprep.mubr.f32.mxu0 0.0
    %167 = vmatmul.mubr.f32.gmra.mrb[0].mxu0 %v68
    %v168 = vpop.f32.mrb[0].mxu0
    %v169 = vadd.f32 0.0, %v168
    %v170 = vpop.f32.mrb[0].mxu0
    %v171 = vadd.f32 0.0, %v170
    %172 = vdwg.mxu0
    %v173 = vstv %s69
    %v174 = vmul.f32 %v173, %v62
    %v175 = vadd.f32 %v174, %v169
    %v176 = vadd.f32 %v175, %v63
    %s177 = smul.f32 %s69, %s64
    %v178 = vstv %s177
    %v179 = vadd.f32 %v178, %v171
    %v180 = vstv %s65
    %v181 = vadd.f32 %v179, %v180
    %vm182 = vcmp.eq.s32.totalorder %v67, 0
    %v183 = vld [vmem:[#allocation9] sm:$0x1]
    %v184 = vsel %vm182, %v181, %v183
    %185 = vst [vmem:[#allocation9] sm:$0x1] %v184
    %s186 = sld [smem:[#allocation2 + $0x1]]
    %v187 = vld [vmem:[#allocation8] sm:$0xff]
    %v188 = vld [vmem:[#allocation8 + $0x8] sm:$0xff]
    %v189 = vld [vmem:[#allocation8 + $0x10] sm:$0xff]
    %v190 = vld [vmem:[#allocation8 + $0x18] sm:$0xff]
    %v191 = vld [vmem:[#allocation8 + $0x20] sm:$0xff]
    %v192 = vld [vmem:[#allocation8 + $0x28] sm:$0xff]
    %v193 = vld [vmem:[#allocation8 + $0x30] sm:$0xff]
    %v194 = vld [vmem:[#allocation8 + $0x38] sm:$0xff]
    %v195 = vld [vmem:[#allocation8 + $0x40] sm:$0xff]
    %v196 = vld [vmem:[#allocation8 + $0x48] sm:$0xff]
    %v197 = vld [vmem:[#allocation8 + $0x50] sm:$0xff]
    %v198 = vld [vmem:[#allocation8 + $0x58] sm:$0xff]
    %v199 = vld [vmem:[#allocation8 + $0x60] sm:$0xff]
    %v200 = vld [vmem:[#allocation8 + $0x68] sm:$0xff]
    %v201 = vld [vmem:[#allocation8 + $0x70] sm:$0xff]
    %v202 = vld [vmem:[#allocation8 + $0x78] sm:$0xff]
    %v203 = vld [vmem:[#allocation8 + $0x80] sm:$0xff]
    %v204 = vld [vmem:[#allocation8 + $0x88] sm:$0xff]
    %v205 = vld [vmem:[#allocation8 + $0x90] sm:$0xff]
    %v206 = vld [vmem:[#allocation8 + $0x98] sm:$0xff]
    %v207 = vld [vmem:[#allocation8 + $0xa0] sm:$0xff]
    %v208 = vld [vmem:[#allocation8 + $0xa8] sm:$0xff]
    %v209 = vld [vmem:[#allocation8 + $0xb0] sm:$0xff]
    %v210 = vld [vmem:[#allocation8 + $0xb8] sm:$0xff]
    %v211 = vld [vmem:[#allocation8 + $0xc0] sm:$0xff]
    %v212 = vld [vmem:[#allocation8 + $0xc8] sm:$0xff]
    %v213 = vld [vmem:[#allocation8 + $0xd0] sm:$0xff]
    %v214 = vld [vmem:[#allocation8 + $0xd8] sm:$0xff]
    %v215 = vld [vmem:[#allocation8 + $0xe0] sm:$0xff]
    %v216 = vld [vmem:[#allocation8 + $0xe8] sm:$0xff]
    %v217 = vld [vmem:[#allocation8 + $0xf0] sm:$0xff]
    %v218 = vld [vmem:[#allocation8 + $0xf8] sm:$0xff]
    %219 = vmatprep.subr.mxu0 %v188
    %220 = vmatpush1.msra.mxu0 %v187
    %221 = vmatprep.subr.mxu0 %v190
    %222 = vmatpush1.msra.mxu0 %v189
    %223 = vmatprep.subr.mxu0 %v192
    %224 = vmatpush1.msra.mxu0 %v191
    %225 = vmatprep.subr.mxu0 %v194
    %226 = vmatpush1.msra.mxu0 %v193
    %227 = vmatprep.subr.mxu0 %v196
    %228 = vmatpush1.msra.mxu0 %v195
    %229 = vmatprep.subr.mxu0 %v198
    %230 = vmatpush1.msra.mxu0 %v197
    %231 = vmatprep.subr.mxu0 %v200
    %232 = vmatpush1.msra.mxu0 %v199
    %233 = vmatprep.subr.mxu0 %v202
    %234 = vmatpush1.msra.mxu0 %v201
    %235 = vmatprep.subr.mxu0 %v204
    %236 = vmatpush1.msra.mxu0 %v203
    %237 = vmatprep.subr.mxu0 %v206
    %238 = vmatpush1.msra.mxu0 %v205
    %239 = vmatprep.subr.mxu0 %v208
    %240 = vmatpush1.msra.mxu0 %v207
    %241 = vmatprep.subr.mxu0 %v210
    %242 = vmatpush1.msra.mxu0 %v209
    %243 = vmatprep.subr.mxu0 %v212
    %244 = vmatpush1.msra.mxu0 %v211
    %245 = vmatprep.subr.mxu0 %v214
    %246 = vmatpush1.msra.mxu0 %v213
    %247 = vmatprep.subr.mxu0 %v216
    %248 = vmatpush1.msra.mxu0 %v215
    %249 = vmatprep.subr.mxu0 %v218
    %250 = vmatpush1.msra.mxu0 %v217
    %251 = vmatprep.subr.mxu0 0.0
    %252 = vmatpush1.msra.mxu0 0.0
    %253 = vmatprep.subr.mxu0 0.0
    %254 = vmatpush1.msra.mxu0 0.0
    %255 = vmatprep.subr.mxu0 0.0
    %256 = vmatpush1.msra.mxu0 0.0
    %257 = vmatprep.subr.mxu0 0.0
    %258 = vmatpush1.msra.mxu0 0.0
    %259 = vmatprep.subr.mxu0 0.0
    %260 = vmatpush1.msra.mxu0 0.0
    %261 = vmatprep.subr.mxu0 0.0
    %262 = vmatpush1.msra.mxu0 0.0
    %263 = vmatprep.subr.mxu0 0.0
    %264 = vmatpush1.msra.mxu0 0.0
    %265 = vmatprep.subr.mxu0 0.0
    %266 = vmatpush1.msra.mxu0 0.0
    %267 = vmatprep.subr.mxu0 0.0
    %268 = vmatpush1.msra.mxu0 0.0
    %269 = vmatprep.subr.mxu0 0.0
    %270 = vmatpush1.msra.mxu0 0.0
    %271 = vmatprep.subr.mxu0 0.0
    %272 = vmatpush1.msra.mxu0 0.0
    %273 = vmatprep.subr.mxu0 0.0
    %274 = vmatpush1.msra.mxu0 0.0
    %275 = vmatprep.subr.mxu0 0.0
    %276 = vmatpush1.msra.mxu0 0.0
    %277 = vmatprep.subr.mxu0 0.0
    %278 = vmatpush1.msra.mxu0 0.0
    %279 = vmatprep.subr.mxu0 0.0
    %280 = vmatpush1.msra.mxu0 0.0
    %281 = vmatprep.subr.mxu0 0.0
    %282 = vmatpush1.msra.mxu0 0.0
    %283 = vmatprep.mubr.f32.mxu0 0.0
    %284 = vmatmul.mubr.f32.gmra.mrb[0].mxu0 %v176
    %v285 = vpop.f32.mrb[0].mxu0
    %v286 = vadd.f32 0.0, %v285
    %v287 = vpop.f32.mrb[0].mxu0
    %v288 = vadd.f32 0.0, %v287
    %289 = vdwg.mxu0
    %v290 = vstv %s186
    %v291 = vmul.f32 %v290, %v62
    %v292 = vadd.f32 %v291, %v286
    %v293 = vadd.f32 %v292, %v63
    %s294 = smul.f32 %s186, %s64
    %v295 = vstv %s294
    %v296 = vadd.f32 %v295, %v288
    %v297 = vadd.f32 %v296, %v180
    %vm298 = vcmp.eq.s32.totalorder %v67, 1
    %v299 = vld [vmem:[#allocation9] sm:$0x1]
    %v300 = vsel %vm298, %v297, %v299
    %301 = vst [vmem:[#allocation9] sm:$0x1] %v300
    %s302 = sld [smem:[#allocation2 + $0x2]]
    %v303 = vld [vmem:[#allocation8] sm:$0xff]
    %v304 = vld [vmem:[#allocation8 + $0x8] sm:$0xff]
    %v305 = vld [vmem:[#allocation8 + $0x10] sm:$0xff]
    %v306 = vld [vmem:[#allocation8 + $0x18] sm:$0xff]
    %v307 = vld [vmem:[#allocation8 + $0x20] sm:$0xff]
    %v308 = vld [vmem:[#allocation8 + $0x28] sm:$0xff]
    %v309 = vld [vmem:[#allocation8 + $0x30] sm:$0xff]
    %v310 = vld [vmem:[#allocation8 + $0x38] sm:$0xff]
    %v311 = vld [vmem:[#allocation8 + $0x40] sm:$0xff]
    %v312 = vld [vmem:[#allocation8 + $0x48] sm:$0xff]
    %v313 = vld [vmem:[#allocation8 + $0x50] sm:$0xff]
    %v314 = vld [vmem:[#allocation8 + $0x58] sm:$0xff]
    %v315 = vld [vmem:[#allocation8 + $0x60] sm:$0xff]
    %v316 = vld [vmem:[#allocation8 + $0x68] sm:$0xff]
    %v317 = vld [vmem:[#allocation8 + $0x70] sm:$0xff]
    %v318 = vld [vmem:[#allocation8 + $0x78] sm:$0xff]
    %v319 = vld [vmem:[#allocation8 + $0x80] sm:$0xff]
    %v320 = vld [vmem:[#allocation8 + $0x88] sm:$0xff]
    %v321 = vld [vmem:[#allocation8 + $0x90] sm:$0xff]
    %v322 = vld [vmem:[#allocation8 + $0x98] sm:$0xff]
    %v323 = vld [vmem:[#allocation8 + $0xa0] sm:$0xff]
    %v324 = vld [vmem:[#allocation8 + $0xa8] sm:$0xff]
    %v325 = vld [vmem:[#allocation8 + $0xb0] sm:$0xff]
    %v326 = vld [vmem:[#allocation8 + $0xb8] sm:$0xff]
    %v327 = vld [vmem:[#allocation8 + $0xc0] sm:$0xff]
    %v328 = vld [vmem:[#allocation8 + $0xc8] sm:$0xff]
    %v329 = vld [vmem:[#allocation8 + $0xd0] sm:$0xff]
    %v330 = vld [vmem:[#allocation8 + $0xd8] sm:$0xff]
    %v331 = vld [vmem:[#allocation8 + $0xe0] sm:$0xff]
    %v332 = vld [vmem:[#allocation8 + $0xe8] sm:$0xff]
    %v333 = vld [vmem:[#allocation8 + $0xf0] sm:$0xff]
    %v334 = vld [vmem:[#allocation8 + $0xf8] sm:$0xff]
    %335 = vmatprep.subr.mxu0 %v304
    %336 = vmatpush1.msra.mxu0 %v303
    %337 = vmatprep.subr.mxu0 %v306
    %338 = vmatpush1.msra.mxu0 %v305
    %339 = vmatprep.subr.mxu0 %v308
    %340 = vmatpush1.msra.mxu0 %v307
    %341 = vmatprep.subr.mxu0 %v310
    %342 = vmatpush1.msra.mxu0 %v309
    %343 = vmatprep.subr.mxu0 %v312
    %344 = vmatpush1.msra.mxu0 %v311
    %345 = vmatprep.subr.mxu0 %v314
    %346 = vmatpush1.msra.mxu0 %v313
    %347 = vmatprep.subr.mxu0 %v316
    %348 = vmatpush1.msra.mxu0 %v315
    %349 = vmatprep.subr.mxu0 %v318
    %350 = vmatpush1.msra.mxu0 %v317
    %351 = vmatprep.subr.mxu0 %v320
    %352 = vmatpush1.msra.mxu0 %v319
    %353 = vmatprep.subr.mxu0 %v322
    %354 = vmatpush1.msra.mxu0 %v321
    %355 = vmatprep.subr.mxu0 %v324
    %356 = vmatpush1.msra.mxu0 %v323
    %357 = vmatprep.subr.mxu0 %v326
    %358 = vmatpush1.msra.mxu0 %v325
    %359 = vmatprep.subr.mxu0 %v328
    %360 = vmatpush1.msra.mxu0 %v327
    %361 = vmatprep.subr.mxu0 %v330
    %362 = vmatpush1.msra.mxu0 %v329
    %363 = vmatprep.subr.mxu0 %v332
    %364 = vmatpush1.msra.mxu0 %v331
    %365 = vmatprep.subr.mxu0 %v334
    %366 = vmatpush1.msra.mxu0 %v333
    %367 = vmatprep.subr.mxu0 0.0
    %368 = vmatpush1.msra.mxu0 0.0
    %369 = vmatprep.subr.mxu0 0.0
    %370 = vmatpush1.msra.mxu0 0.0
    %371 = vmatprep.subr.mxu0 0.0
    %372 = vmatpush1.msra.mxu0 0.0
    %373 = vmatprep.subr.mxu0 0.0
    %374 = vmatpush1.msra.mxu0 0.0
    %375 = vmatprep.subr.mxu0 0.0
    %376 = vmatpush1.msra.mxu0 0.0
    %377 = vmatprep.subr.mxu0 0.0
    %378 = vmatpush1.msra.mxu0 0.0
    %379 = vmatprep.subr.mxu0 0.0
    %380 = vmatpush1.msra.mxu0 0.0
    %381 = vmatprep.subr.mxu0 0.0
    %382 = vmatpush1.msra.mxu0 0.0
    %383 = vmatprep.subr.mxu0 0.0
    %384 = vmatpush1.msra.mxu0 0.0
    %385 = vmatprep.subr.mxu0 0.0
    %386 = vmatpush1.msra.mxu0 0.0
    %387 = vmatprep.subr.mxu0 0.0
    %388 = vmatpush1.msra.mxu0 0.0
    %389 = vmatprep.subr.mxu0 0.0
    %390 = vmatpush1.msra.mxu0 0.0
    %391 = vmatprep.subr.mxu0 0.0
    %392 = vmatpush1.msra.mxu0 0.0
    %393 = vmatprep.subr.mxu0 0.0
    %394 = vmatpush1.msra.mxu0 0.0
    %395 = vmatprep.subr.mxu0 0.0
    %396 = vmatpush1.msra.mxu0 0.0
    %397 = vmatprep.subr.mxu0 0.0
    %398 = vmatpush1.msra.mxu0 0.0
    %399 = vmatprep.mubr.f32.mxu0 0.0
    %400 = vmatmul.mubr.f32.gmra.mrb[0].mxu0 %v293
    %v401 = vpop.f32.mrb[0].mxu0
    %v402 = vadd.f32 0.0, %v401
    %v403 = vpop.f32.mrb[0].mxu0
    %v404 = vadd.f32 0.0, %v403
    %405 = vdwg.mxu0
    %v406 = vstv %s302
    %v407 = vmul.f32 %v406, %v62
    %v408 = vadd.f32 %v407, %v402
    %v409 = vadd.f32 %v408, %v63
    %s410 = smul.f32 %s302, %s64
    %v411 = vstv %s410
    %v412 = vadd.f32 %v411, %v404
    %v413 = vadd.f32 %v412, %v180
    %vm414 = vcmp.eq.s32.totalorder %v67, 2
    %v415 = vld [vmem:[#allocation9] sm:$0x1]
    %v416 = vsel %vm414, %v413, %v415
    %417 = vst [vmem:[#allocation9] sm:$0x1] %v416
    %s418 = sld [smem:[#allocation2 + $0x3]]
    %v419 = vld [vmem:[#allocation8] sm:$0xff]
    %v420 = vld [vmem:[#allocation8 + $0x8] sm:$0xff]
    %v421 = vld [vmem:[#allocation8 + $0x10] sm:$0xff]
    %v422 = vld [vmem:[#allocation8 + $0x18] sm:$0xff]
    %v423 = vld [vmem:[#allocation8 + $0x20] sm:$0xff]
    %v424 = vld [vmem:[#allocation8 + $0x28] sm:$0xff]
    %v425 = vld [vmem:[#allocation8 + $0x30] sm:$0xff]
    %v426 = vld [vmem:[#allocation8 + $0x38] sm:$0xff]
    %v427 = vld [vmem:[#allocation8 + $0x40] sm:$0xff]
    %v428 = vld [vmem:[#allocation8 + $0x48] sm:$0xff]
    %v429 = vld [vmem:[#allocation8 + $0x50] sm:$0xff]
    %v430 = vld [vmem:[#allocation8 + $0x58] sm:$0xff]
    %v431 = vld [vmem:[#allocation8 + $0x60] sm:$0xff]
    %v432 = vld [vmem:[#allocation8 + $0x68] sm:$0xff]
    %v433 = vld [vmem:[#allocation8 + $0x70] sm:$0xff]
    %v434 = vld [vmem:[#allocation8 + $0x78] sm:$0xff]
    %v435 = vld [vmem:[#allocation8 + $0x80] sm:$0xff]
    %v436 = vld [vmem:[#allocation8 + $0x88] sm:$0xff]
    %v437 = vld [vmem:[#allocation8 + $0x90] sm:$0xff]
    %v438 = vld [vmem:[#allocation8 + $0x98] sm:$0xff]
    %v439 = vld [vmem:[#allocation8 + $0xa0] sm:$0xff]
    %v440 = vld [vmem:[#allocation8 + $0xa8] sm:$0xff]
    %v441 = vld [vmem:[#allocation8 + $0xb0] sm:$0xff]
    %v442 = vld [vmem:[#allocation8 + $0xb8] sm:$0xff]
    %v443 = vld [vmem:[#allocation8 + $0xc0] sm:$0xff]
    %v444 = vld [vmem:[#allocation8 + $0xc8] sm:$0xff]
    %v445 = vld [vmem:[#allocation8 + $0xd0] sm:$0xff]
    %v446 = vld [vmem:[#allocation8 + $0xd8] sm:$0xff]
    %v447 = vld [vmem:[#allocation8 + $0xe0] sm:$0xff]
    %v448 = vld [vmem:[#allocation8 + $0xe8] sm:$0xff]
    %v449 = vld [vmem:[#allocation8 + $0xf0] sm:$0xff]
    %v450 = vld [vmem:[#allocation8 + $0xf8] sm:$0xff]
    %451 = vmatprep.subr.mxu0 %v420
    %452 = vmatpush1.msra.mxu0 %v419
    %453 = vmatprep.subr.mxu0 %v422
    %454 = vmatpush1.msra.mxu0 %v421
    %455 = vmatprep.subr.mxu0 %v424
    %456 = vmatpush1.msra.mxu0 %v423
    %457 = vmatprep.subr.mxu0 %v426
    %458 = vmatpush1.msra.mxu0 %v425
    %459 = vmatprep.subr.mxu0 %v428
    %460 = vmatpush1.msra.mxu0 %v427
    %461 = vmatprep.subr.mxu0 %v430
    %462 = vmatpush1.msra.mxu0 %v429
    %463 = vmatprep.subr.mxu0 %v432
    %464 = vmatpush1.msra.mxu0 %v431
    %465 = vmatprep.subr.mxu0 %v434
    %466 = vmatpush1.msra.mxu0 %v433
    %467 = vmatprep.subr.mxu0 %v436
    %468 = vmatpush1.msra.mxu0 %v435
    %469 = vmatprep.subr.mxu0 %v438
    %470 = vmatpush1.msra.mxu0 %v437
    %471 = vmatprep.subr.mxu0 %v440
    %472 = vmatpush1.msra.mxu0 %v439
    %473 = vmatprep.subr.mxu0 %v442
    %474 = vmatpush1.msra.mxu0 %v441
    %475 = vmatprep.subr.mxu0 %v444
    %476 = vmatpush1.msra.mxu0 %v443
    %477 = vmatprep.subr.mxu0 %v446
    %478 = vmatpush1.msra.mxu0 %v445
    %479 = vmatprep.subr.mxu0 %v448
    %480 = vmatpush1.msra.mxu0 %v447
    %481 = vmatprep.subr.mxu0 %v450
    %482 = vmatpush1.msra.mxu0 %v449
    %483 = vmatprep.subr.mxu0 0.0
    %484 = vmatpush1.msra.mxu0 0.0
    %485 = vmatprep.subr.mxu0 0.0
    %486 = vmatpush1.msra.mxu0 0.0
    %487 = vmatprep.subr.mxu0 0.0
    %488 = vmatpush1.msra.mxu0 0.0
    %489 = vmatprep.subr.mxu0 0.0
    %490 = vmatpush1.msra.mxu0 0.0
    %491 = vmatprep.subr.mxu0 0.0
    %492 = vmatpush1.msra.mxu0 0.0
    %493 = vmatprep.subr.mxu0 0.0
    %494 = vmatpush1.msra.mxu0 0.0
    %495 = vmatprep.subr.mxu0 0.0
    %496 = vmatpush1.msra.mxu0 0.0
    %497 = vmatprep.subr.mxu0 0.0
    %498 = vmatpush1.msra.mxu0 0.0
    %499 = vmatprep.subr.mxu0 0.0
    %500 = vmatpush1.msra.mxu0 0.0
    %501 = vmatprep.subr.mxu0 0.0
    %502 = vmatpush1.msra.mxu0 0.0
    %503 = vmatprep.subr.mxu0 0.0
    %504 = vmatpush1.msra.mxu0 0.0
    %505 = vmatprep.subr.mxu0 0.0
    %506 = vmatpush1.msra.mxu0 0.0
    %507 = vmatprep.subr.mxu0 0.0
    %508 = vmatpush1.msra.mxu0 0.0
    %509 = vmatprep.subr.mxu0 0.0
    %510 = vmatpush1.msra.mxu0 0.0
    %511 = vmatprep.subr.mxu0 0.0
    %512 = vmatpush1.msra.mxu0 0.0
    %513 = vmatprep.subr.mxu0 0.0
    %514 = vmatpush1.msra.mxu0 0.0
    %515 = vmatprep.mubr.f32.mxu0 0.0
    %516 = vmatmul.mubr.f32.gmra.mrb[0].mxu0 %v409
    %v517 = vpop.f32.mrb[0].mxu0
    %v518 = vadd.f32 0.0, %v517
    %v519 = vpop.f32.mrb[0].mxu0
    %v520 = vadd.f32 0.0, %v519
    %521 = vdwg.mxu0
    %v522 = vstv %s418
    %v523 = vmul.f32 %v522, %v62
    %v524 = vadd.f32 %v523, %v518
    %v525 = vadd.f32 %v524, %v63
    %s526 = smul.f32 %s418, %s64
    %v527 = vstv %s526
    %v528 = vadd.f32 %v527, %v520
    %v529 = vadd.f32 %v528, %v180
    %vm530 = vcmp.eq.s32.totalorder %v67, 3
    %v531 = vld [vmem:[#allocation9] sm:$0x1]
    %v532 = vsel %vm530, %v529, %v531
    %533 = vst [vmem:[#allocation9] sm:$0x1] %v532
    %s534 = sld [smem:[#allocation2 + $0x4]]
    %v535 = vld [vmem:[#allocation8] sm:$0xff]
    %v536 = vld [vmem:[#allocation8 + $0x8] sm:$0xff]
    %v537 = vld [vmem:[#allocation8 + $0x10] sm:$0xff]
    %v538 = vld [vmem:[#allocation8 + $0x18] sm:$0xff]
    %v539 = vld [vmem:[#allocation8 + $0x20] sm:$0xff]
    %v540 = vld [vmem:[#allocation8 + $0x28] sm:$0xff]
    %v541 = vld [vmem:[#allocation8 + $0x30] sm:$0xff]
    %v542 = vld [vmem:[#allocation8 + $0x38] sm:$0xff]
    %v543 = vld [vmem:[#allocation8 + $0x40] sm:$0xff]
    %v544 = vld [vmem:[#allocation8 + $0x48] sm:$0xff]
    %v545 = vld [vmem:[#allocation8 + $0x50] sm:$0xff]
    %v546 = vld [vmem:[#allocation8 + $0x58] sm:$0xff]
    %v547 = vld [vmem:[#allocation8 + $0x60] sm:$0xff]
    %v548 = vld [vmem:[#allocation8 + $0x68] sm:$0xff]
    %v549 = vld [vmem:[#allocation8 + $0x70] sm:$0xff]
    %v550 = vld [vmem:[#allocation8 + $0x78] sm:$0xff]
    %v551 = vld [vmem:[#allocation8 + $0x80] sm:$0xff]
    %v552 = vld [vmem:[#allocation8 + $0x88] sm:$0xff]
    %v553 = vld [vmem:[#allocation8 + $0x90] sm:$0xff]
    %v554 = vld [vmem:[#allocation8 + $0x98] sm:$0xff]
    %v555 = vld [vmem:[#allocation8 + $0xa0] sm:$0xff]
    %v556 = vld [vmem:[#allocation8 + $0xa8] sm:$0xff]
    %v557 = vld [vmem:[#allocation8 + $0xb0] sm:$0xff]
    %v558 = vld [vmem:[#allocation8 + $0xb8] sm:$0xff]
    %v559 = vld [vmem:[#allocation8 + $0xc0] sm:$0xff]
    %v560 = vld [vmem:[#allocation8 + $0xc8] sm:$0xff]
    %v561 = vld [vmem:[#allocation8 + $0xd0] sm:$0xff]
    %v562 = vld [vmem:[#allocation8 + $0xd8] sm:$0xff]
    %v563 = vld [vmem:[#allocation8 + $0xe0] sm:$0xff]
    %v564 = vld [vmem:[#allocation8 + $0xe8] sm:$0xff]
    %v565 = vld [vmem:[#allocation8 + $0xf0] sm:$0xff]
    %v566 = vld [vmem:[#allocation8 + $0xf8] sm:$0xff]
    %567 = vmatprep.subr.mxu0 %v536
    %568 = vmatpush1.msra.mxu0 %v535
    %569 = vmatprep.subr.mxu0 %v538
    %570 = vmatpush1.msra.mxu0 %v537
    %571 = vmatprep.subr.mxu0 %v540
    %572 = vmatpush1.msra.mxu0 %v539
    %573 = vmatprep.subr.mxu0 %v542
    %574 = vmatpush1.msra.mxu0 %v541
    %575 = vmatprep.subr.mxu0 %v544
    %576 = vmatpush1.msra.mxu0 %v543
    %577 = vmatprep.subr.mxu0 %v546
    %578 = vmatpush1.msra.mxu0 %v545
    %579 = vmatprep.subr.mxu0 %v548
    %580 = vmatpush1.msra.mxu0 %v547
    %581 = vmatprep.subr.mxu0 %v550
    %582 = vmatpush1.msra.mxu0 %v549
    %583 = vmatprep.subr.mxu0 %v552
    %584 = vmatpush1.msra.mxu0 %v551
    %585 = vmatprep.subr.mxu0 %v554
    %586 = vmatpush1.msra.mxu0 %v553
    %587 = vmatprep.subr.mxu0 %v556
    %588 = vmatpush1.msra.mxu0 %v555
    %589 = vmatprep.subr.mxu0 %v558
    %590 = vmatpush1.msra.mxu0 %v557
    %591 = vmatprep.subr.mxu0 %v560
    %592 = vmatpush1.msra.mxu0 %v559
    %593 = vmatprep.subr.mxu0 %v562
    %594 = vmatpush1.msra.mxu0 %v561
    %595 = vmatprep.subr.mxu0 %v564
    %596 = vmatpush1.msra.mxu0 %v563
    %597 = vmatprep.subr.mxu0 %v566
    %598 = vmatpush1.msra.mxu0 %v565
    %599 = vmatprep.subr.mxu0 0.0
    %600 = vmatpush1.msra.mxu0 0.0
    %601 = vmatprep.subr.mxu0 0.0
    %602 = vmatpush1.msra.mxu0 0.0
    %603 = vmatprep.subr.mxu0 0.0
    %604 = vmatpush1.msra.mxu0 0.0
    %605 = vmatprep.subr.mxu0 0.0
    %606 = vmatpush1.msra.mxu0 0.0
    %607 = vmatprep.subr.mxu0 0.0
    %608 = vmatpush1.msra.mxu0 0.0
    %609 = vmatprep.subr.mxu0 0.0
    %610 = vmatpush1.msra.mxu0 0.0
    %611 = vmatprep.subr.mxu0 0.0
    %612 = vmatpush1.msra.mxu0 0.0
    %613 = vmatprep.subr.mxu0 0.0
    %614 = vmatpush1.msra.mxu0 0.0
    %615 = vmatprep.subr.mxu0 0.0
    %616 = vmatpush1.msra.mxu0 0.0
    %617 = vmatprep.subr.mxu0 0.0
    %618 = vmatpush1.msra.mxu0 0.0
    %619 = vmatprep.subr.mxu0 0.0
    %620 = vmatpush1.msra.mxu0 0.0
    %621 = vmatprep.subr.mxu0 0.0
    %622 = vmatpush1.msra.mxu0 0.0
    %623 = vmatprep.subr.mxu0 0.0
    %624 = vmatpush1.msra.mxu0 0.0
    %625 = vmatprep.subr.mxu0 0.0
    %626 = vmatpush1.msra.mxu0 0.0
    %627 = vmatprep.subr.mxu0 0.0
    %628 = vmatpush1.msra.mxu0 0.0
    %629 = vmatprep.subr.mxu0 0.0
    %630 = vmatpush1.msra.mxu0 0.0
    %631 = vmatprep.mubr.f32.mxu0 0.0
    %632 = vmatmul.mubr.f32.gmra.mrb[0].mxu0 %v525
    %v633 = vpop.f32.mrb[0].mxu0
    %v634 = vadd.f32 0.0, %v633
    %v635 = vpop.f32.mrb[0].mxu0
    %v636 = vadd.f32 0.0, %v635
    %637 = vdwg.mxu0
    %v638 = vstv %s534
    %v639 = vmul.f32 %v638, %v62
    %v640 = vadd.f32 %v639, %v634
    %v641 = vadd.f32 %v640, %v63
    %s642 = smul.f32 %s534, %s64
    %v643 = vstv %s642
    %v644 = vadd.f32 %v643, %v636
    %v645 = vadd.f32 %v644, %v180
    %vm646 = vcmp.eq.s32.totalorder %v67, 4
    %v647 = vld [vmem:[#allocation9] sm:$0x1]
    %v648 = vsel %vm646, %v645, %v647
    %649 = vst [vmem:[#allocation9] sm:$0x1] %v648
    %s650 = sld [smem:[#allocation2 + $0x5]]
    %v651 = vld [vmem:[#allocation8] sm:$0xff]
    %v652 = vld [vmem:[#allocation8 + $0x8] sm:$0xff]
    %v653 = vld [vmem:[#allocation8 + $0x10] sm:$0xff]
    %v654 = vld [vmem:[#allocation8 + $0x18] sm:$0xff]
    %v655 = vld [vmem:[#allocation8 + $0x20] sm:$0xff]
    %v656 = vld [vmem:[#allocation8 + $0x28] sm:$0xff]
    %v657 = vld [vmem:[#allocation8 + $0x30] sm:$0xff]
    %v658 = vld [vmem:[#allocation8 + $0x38] sm:$0xff]
    %v659 = vld [vmem:[#allocation8 + $0x40] sm:$0xff]
    %v660 = vld [vmem:[#allocation8 + $0x48] sm:$0xff]
    %v661 = vld [vmem:[#allocation8 + $0x50] sm:$0xff]
    %v662 = vld [vmem:[#allocation8 + $0x58] sm:$0xff]
    %v663 = vld [vmem:[#allocation8 + $0x60] sm:$0xff]
    %v664 = vld [vmem:[#allocation8 + $0x68] sm:$0xff]
    %v665 = vld [vmem:[#allocation8 + $0x70] sm:$0xff]
    %v666 = vld [vmem:[#allocation8 + $0x78] sm:$0xff]
    %v667 = vld [vmem:[#allocation8 + $0x80] sm:$0xff]
    %v668 = vld [vmem:[#allocation8 + $0x88] sm:$0xff]
    %v669 = vld [vmem:[#allocation8 + $0x90] sm:$0xff]
    %v670 = vld [vmem:[#allocation8 + $0x98] sm:$0xff]
    %v671 = vld [vmem:[#allocation8 + $0xa0] sm:$0xff]
    %v672 = vld [vmem:[#allocation8 + $0xa8] sm:$0xff]
    %v673 = vld [vmem:[#allocation8 + $0xb0] sm:$0xff]
    %v674 = vld [vmem:[#allocation8 + $0xb8] sm:$0xff]
    %v675 = vld [vmem:[#allocation8 + $0xc0] sm:$0xff]
    %v676 = vld [vmem:[#allocation8 + $0xc8] sm:$0xff]
    %v677 = vld [vmem:[#allocation8 + $0xd0] sm:$0xff]
    %v678 = vld [vmem:[#allocation8 + $0xd8] sm:$0xff]
    %v679 = vld [vmem:[#allocation8 + $0xe0] sm:$0xff]
    %v680 = vld [vmem:[#allocation8 + $0xe8] sm:$0xff]
    %v681 = vld [vmem:[#allocation8 + $0xf0] sm:$0xff]
    %v682 = vld [vmem:[#allocation8 + $0xf8] sm:$0xff]
    %683 = vmatprep.subr.mxu0 %v652
    %684 = vmatpush1.msra.mxu0 %v651
    %685 = vmatprep.subr.mxu0 %v654
    %686 = vmatpush1.msra.mxu0 %v653
    %687 = vmatprep.subr.mxu0 %v656
    %688 = vmatpush1.msra.mxu0 %v655
    %689 = vmatprep.subr.mxu0 %v658
    %690 = vmatpush1.msra.mxu0 %v657
    %691 = vmatprep.subr.mxu0 %v660
    %692 = vmatpush1.msra.mxu0 %v659
    %693 = vmatprep.subr.mxu0 %v662
    %694 = vmatpush1.msra.mxu0 %v661
    %695 = vmatprep.subr.mxu0 %v664
    %696 = vmatpush1.msra.mxu0 %v663
    %697 = vmatprep.subr.mxu0 %v666
    %698 = vmatpush1.msra.mxu0 %v665
    %699 = vmatprep.subr.mxu0 %v668
    %700 = vmatpush1.msra.mxu0 %v667
    %701 = vmatprep.subr.mxu0 %v670
    %702 = vmatpush1.msra.mxu0 %v669
    %703 = vmatprep.subr.mxu0 %v672
    %704 = vmatpush1.msra.mxu0 %v671
    %705 = vmatprep.subr.mxu0 %v674
    %706 = vmatpush1.msra.mxu0 %v673
    %707 = vmatprep.subr.mxu0 %v676
    %708 = vmatpush1.msra.mxu0 %v675
    %709 = vmatprep.subr.mxu0 %v678
    %710 = vmatpush1.msra.mxu0 %v677
    %711 = vmatprep.subr.mxu0 %v680
    %712 = vmatpush1.msra.mxu0 %v679
    %713 = vmatprep.subr.mxu0 %v682
    %714 = vmatpush1.msra.mxu0 %v681
    %715 = vmatprep.subr.mxu0 0.0
    %716 = vmatpush1.msra.mxu0 0.0
    %717 = vmatprep.subr.mxu0 0.0
    %718 = vmatpush1.msra.mxu0 0.0
    %719 = vmatprep.subr.mxu0 0.0
    %720 = vmatpush1.msra.mxu0 0.0
    %721 = vmatprep.subr.mxu0 0.0
    %722 = vmatpush1.msra.mxu0 0.0
    %723 = vmatprep.subr.mxu0 0.0
    %724 = vmatpush1.msra.mxu0 0.0
    %725 = vmatprep.subr.mxu0 0.0
    %726 = vmatpush1.msra.mxu0 0.0
    %727 = vmatprep.subr.mxu0 0.0
    %728 = vmatpush1.msra.mxu0 0.0
    %729 = vmatprep.subr.mxu0 0.0
    %730 = vmatpush1.msra.mxu0 0.0
    %731 = vmatprep.subr.mxu0 0.0
    %732 = vmatpush1.msra.mxu0 0.0
    %733 = vmatprep.subr.mxu0 0.0
    %734 = vmatpush1.msra.mxu0 0.0
    %735 = vmatprep.subr.mxu0 0.0
    %736 = vmatpush1.msra.mxu0 0.0
    %737 = vmatprep.subr.mxu0 0.0
    %738 = vmatpush1.msra.mxu0 0.0
    %739 = vmatprep.subr.mxu0 0.0
    %740 = vmatpush1.msra.mxu0 0.0
    %741 = vmatprep.subr.mxu0 0.0
    %742 = vmatpush1.msra.mxu0 0.0
    %743 = vmatprep.subr.mxu0 0.0
    %744 = vmatpush1.msra.mxu0 0.0
    %745 = vmatprep.subr.mxu0 0.0
    %746 = vmatpush1.msra.mxu0 0.0
    %747 = vmatprep.mubr.f32.mxu0 0.0
    %748 = vmatmul.mubr.f32.gmra.mrb[0].mxu0 %v641
    %v749 = vpop.f32.mrb[0].mxu0
    %v750 = vadd.f32 0.0, %v749
    %v751 = vpop.f32.mrb[0].mxu0
    %v752 = vadd.f32 0.0, %v751
    %753 = vdwg.mxu0
    %v754 = vstv %s650
    %v755 = vmul.f32 %v754, %v62
    %v756 = vadd.f32 %v755, %v750
    %v757 = vadd.f32 %v756, %v63
    %s758 = smul.f32 %s650, %s64
    %v759 = vstv %s758
    %v760 = vadd.f32 %v759, %v752
    %v761 = vadd.f32 %v760, %v180
    %vm762 = vcmp.eq.s32.totalorder %v67, 5
    %v763 = vld [vmem:[#allocation9] sm:$0x1]
    %v764 = vsel %vm762, %v761, %v763
    %765 = vst [vmem:[#allocation9] sm:$0x1] %v764
    %s766 = sld [smem:[#allocation2 + $0x6]]
    %v767 = vld [vmem:[#allocation8] sm:$0xff]
    %v768 = vld [vmem:[#allocation8 + $0x8] sm:$0xff]
    %v769 = vld [vmem:[#allocation8 + $0x10] sm:$0xff]
    %v770 = vld [vmem:[#allocation8 + $0x18] sm:$0xff]
    %v771 = vld [vmem:[#allocation8 + $0x20] sm:$0xff]
    %v772 = vld [vmem:[#allocation8 + $0x28] sm:$0xff]
    %v773 = vld [vmem:[#allocation8 + $0x30] sm:$0xff]
    %v774 = vld [vmem:[#allocation8 + $0x38] sm:$0xff]
    %v775 = vld [vmem:[#allocation8 + $0x40] sm:$0xff]
    %v776 = vld [vmem:[#allocation8 + $0x48] sm:$0xff]
    %v777 = vld [vmem:[#allocation8 + $0x50] sm:$0xff]
    %v778 = vld [vmem:[#allocation8 + $0x58] sm:$0xff]
    %v779 = vld [vmem:[#allocation8 + $0x60] sm:$0xff]
    %v780 = vld [vmem:[#allocation8 + $0x68] sm:$0xff]
    %v781 = vld [vmem:[#allocation8 + $0x70] sm:$0xff]
    %v782 = vld [vmem:[#allocation8 + $0x78] sm:$0xff]
    %v783 = vld [vmem:[#allocation8 + $0x80] sm:$0xff]
    %v784 = vld [vmem:[#allocation8 + $0x88] sm:$0xff]
    %v785 = vld [vmem:[#allocation8 + $0x90] sm:$0xff]
    %v786 = vld [vmem:[#allocation8 + $0x98] sm:$0xff]
    %v787 = vld [vmem:[#allocation8 + $0xa0] sm:$0xff]
    %v788 = vld [vmem:[#allocation8 + $0xa8] sm:$0xff]
    %v789 = vld [vmem:[#allocation8 + $0xb0] sm:$0xff]
    %v790 = vld [vmem:[#allocation8 + $0xb8] sm:$0xff]
    %v791 = vld [vmem:[#allocation8 + $0xc0] sm:$0xff]
    %v792 = vld [vmem:[#allocation8 + $0xc8] sm:$0xff]
    %v793 = vld [vmem:[#allocation8 + $0xd0] sm:$0xff]
    %v794 = vld [vmem:[#allocation8 + $0xd8] sm:$0xff]
    %v795 = vld [vmem:[#allocation8 + $0xe0] sm:$0xff]
    %v796 = vld [vmem:[#allocation8 + $0xe8] sm:$0xff]
    %v797 = vld [vmem:[#allocation8 + $0xf0] sm:$0xff]
    %v798 = vld [vmem:[#allocation8 + $0xf8] sm:$0xff]
    %799 = vmatprep.subr.mxu0 %v768
    %800 = vmatpush1.msra.mxu0 %v767
    %801 = vmatprep.subr.mxu0 %v770
    %802 = vmatpush1.msra.mxu0 %v769
    %803 = vmatprep.subr.mxu0 %v772
    %804 = vmatpush1.msra.mxu0 %v771
    %805 = vmatprep.subr.mxu0 %v774
    %806 = vmatpush1.msra.mxu0 %v773
    %807 = vmatprep.subr.mxu0 %v776
    %808 = vmatpush1.msra.mxu0 %v775
    %809 = vmatprep.subr.mxu0 %v778
    %810 = vmatpush1.msra.mxu0 %v777
    %811 = vmatprep.subr.mxu0 %v780
    %812 = vmatpush1.msra.mxu0 %v779
    %813 = vmatprep.subr.mxu0 %v782
    %814 = vmatpush1.msra.mxu0 %v781
    %815 = vmatprep.subr.mxu0 %v784
    %816 = vmatpush1.msra.mxu0 %v783
    %817 = vmatprep.subr.mxu0 %v786
    %818 = vmatpush1.msra.mxu0 %v785
    %819 = vmatprep.subr.mxu0 %v788
    %820 = vmatpush1.msra.mxu0 %v787
    %821 = vmatprep.subr.mxu0 %v790
    %822 = vmatpush1.msra.mxu0 %v789
    %823 = vmatprep.subr.mxu0 %v792
    %824 = vmatpush1.msra.mxu0 %v791
    %825 = vmatprep.subr.mxu0 %v794
    %826 = vmatpush1.msra.mxu0 %v793
    %827 = vmatprep.subr.mxu0 %v796
    %828 = vmatpush1.msra.mxu0 %v795
    %829 = vmatprep.subr.mxu0 %v798
    %830 = vmatpush1.msra.mxu0 %v797
    %831 = vmatprep.subr.mxu0 0.0
    %832 = vmatpush1.msra.mxu0 0.0
    %833 = vmatprep.subr.mxu0 0.0
    %834 = vmatpush1.msra.mxu0 0.0
    %835 = vmatprep.subr.mxu0 0.0
    %836 = vmatpush1.msra.mxu0 0.0
    %837 = vmatprep.subr.mxu0 0.0
    %838 = vmatpush1.msra.mxu0 0.0
    %839 = vmatprep.subr.mxu0 0.0
    %840 = vmatpush1.msra.mxu0 0.0
    %841 = vmatprep.subr.mxu0 0.0
    %842 = vmatpush1.msra.mxu0 0.0
    %843 = vmatprep.subr.mxu0 0.0
    %844 = vmatpush1.msra.mxu0 0.0
    %845 = vmatprep.subr.mxu0 0.0
    %846 = vmatpush1.msra.mxu0 0.0
    %847 = vmatprep.subr.mxu0 0.0
    %848 = vmatpush1.msra.mxu0 0.0
    %849 = vmatprep.subr.mxu0 0.0
    %850 = vmatpush1.msra.mxu0 0.0
    %851 = vmatprep.subr.mxu0 0.0
    %852 = vmatpush1.msra.mxu0 0.0
    %853 = vmatprep.subr.mxu0 0.0
    %854 = vmatpush1.msra.mxu0 0.0
    %855 = vmatprep.subr.mxu0 0.0
    %856 = vmatpush1.msra.mxu0 0.0
    %857 = vmatprep.subr.mxu0 0.0
    %858 = vmatpush1.msra.mxu0 0.0
    %859 = vmatprep.subr.mxu0 0.0
    %860 = vmatpush1.msra.mxu0 0.0
    %861 = vmatprep.subr.mxu0 0.0
    %862 = vmatpush1.msra.mxu0 0.0
    %863 = vmatprep.mubr.f32.mxu0 0.0
    %864 = vmatmul.mubr.f32.gmra.mrb[0].mxu0 %v757
    %v865 = vpop.f32.mrb[0].mxu0
    %v866 = vadd.f32 0.0, %v865
    %v867 = vpop.f32.mrb[0].mxu0
    %v868 = vadd.f32 0.0, %v867
    %869 = vdwg.mxu0
    %v870 = vstv %s766
    %v871 = vmul.f32 %v870, %v62
    %v872 = vadd.f32 %v871, %v866
    %v873 = vadd.f32 %v872, %v63
    %s874 = smul.f32 %s766, %s64
    %v875 = vstv %s874
    %v876 = vadd.f32 %v875, %v868
    %v877 = vadd.f32 %v876, %v180
    %vm878 = vcmp.eq.s32.totalorder %v67, 6
    %v879 = vld [vmem:[#allocation9] sm:$0x1]
    %v880 = vsel %vm878, %v877, %v879
    %881 = vst [vmem:[#allocation9] sm:$0x1] %v880
    %s882 = sld [smem:[#allocation2 + $0x7]]
    %v883 = vld [vmem:[#allocation8] sm:$0xff]
    %v884 = vld [vmem:[#allocation8 + $0x8] sm:$0xff]
    %v885 = vld [vmem:[#allocation8 + $0x10] sm:$0xff]
    %v886 = vld [vmem:[#allocation8 + $0x18] sm:$0xff]
    %v887 = vld [vmem:[#allocation8 + $0x20] sm:$0xff]
    %v888 = vld [vmem:[#allocation8 + $0x28] sm:$0xff]
    %v889 = vld [vmem:[#allocation8 + $0x30] sm:$0xff]
    %v890 = vld [vmem:[#allocation8 + $0x38] sm:$0xff]
    %v891 = vld [vmem:[#allocation8 + $0x40] sm:$0xff]
    %v892 = vld [vmem:[#allocation8 + $0x48] sm:$0xff]
    %v893 = vld [vmem:[#allocation8 + $0x50] sm:$0xff]
    %v894 = vld [vmem:[#allocation8 + $0x58] sm:$0xff]
    %v895 = vld [vmem:[#allocation8 + $0x60] sm:$0xff]
    %v896 = vld [vmem:[#allocation8 + $0x68] sm:$0xff]
    %v897 = vld [vmem:[#allocation8 + $0x70] sm:$0xff]
    %v898 = vld [vmem:[#allocation8 + $0x78] sm:$0xff]
    %v899 = vld [vmem:[#allocation8 + $0x80] sm:$0xff]
    %v900 = vld [vmem:[#allocation8 + $0x88] sm:$0xff]
    %v901 = vld [vmem:[#allocation8 + $0x90] sm:$0xff]
    %v902 = vld [vmem:[#allocation8 + $0x98] sm:$0xff]
    %v903 = vld [vmem:[#allocation8 + $0xa0] sm:$0xff]
    %v904 = vld [vmem:[#allocation8 + $0xa8] sm:$0xff]
    %v905 = vld [vmem:[#allocation8 + $0xb0] sm:$0xff]
    %v906 = vld [vmem:[#allocation8 + $0xb8] sm:$0xff]
    %v907 = vld [vmem:[#allocation8 + $0xc0] sm:$0xff]
    %v908 = vld [vmem:[#allocation8 + $0xc8] sm:$0xff]
    %v909 = vld [vmem:[#allocation8 + $0xd0] sm:$0xff]
    %v910 = vld [vmem:[#allocation8 + $0xd8] sm:$0xff]
    %v911 = vld [vmem:[#allocation8 + $0xe0] sm:$0xff]
    %v912 = vld [vmem:[#allocation8 + $0xe8] sm:$0xff]
    %v913 = vld [vmem:[#allocation8 + $0xf0] sm:$0xff]
    %v914 = vld [vmem:[#allocation8 + $0xf8] sm:$0xff]
    %915 = vmatprep.subr.mxu0 %v884
    %916 = vmatpush1.msra.mxu0 %v883
    %917 = vmatprep.subr.mxu0 %v886
    %918 = vmatpush1.msra.mxu0 %v885
    %919 = vmatprep.subr.mxu0 %v888
    %920 = vmatpush1.msra.mxu0 %v887
    %921 = vmatprep.subr.mxu0 %v890
    %922 = vmatpush1.msra.mxu0 %v889
    %923 = vmatprep.subr.mxu0 %v892
    %924 = vmatpush1.msra.mxu0 %v891
    %925 = vmatprep.subr.mxu0 %v894
    %926 = vmatpush1.msra.mxu0 %v893
    %927 = vmatprep.subr.mxu0 %v896
    %928 = vmatpush1.msra.mxu0 %v895
    %929 = vmatprep.subr.mxu0 %v898
    %930 = vmatpush1.msra.mxu0 %v897
    %931 = vmatprep.subr.mxu0 %v900
    %932 = vmatpush1.msra.mxu0 %v899
    %933 = vmatprep.subr.mxu0 %v902
    %934 = vmatpush1.msra.mxu0 %v901
    %935 = vmatprep.subr.mxu0 %v904
    %936 = vmatpush1.msra.mxu0 %v903
    %937 = vmatprep.subr.mxu0 %v906
    %938 = vmatpush1.msra.mxu0 %v905
    %939 = vmatprep.subr.mxu0 %v908
    %940 = vmatpush1.msra.mxu0 %v907
    %941 = vmatprep.subr.mxu0 %v910
    %942 = vmatpush1.msra.mxu0 %v909
    %943 = vmatprep.subr.mxu0 %v912
    %944 = vmatpush1.msra.mxu0 %v911
    %945 = vmatprep.subr.mxu0 %v914
    %946 = vmatpush1.msra.mxu0 %v913
    %947 = vmatprep.subr.mxu0 0.0
    %948 = vmatpush1.msra.mxu0 0.0
    %949 = vmatprep.subr.mxu0 0.0
    %950 = vmatpush1.msra.mxu0 0.0
    %951 = vmatprep.subr.mxu0 0.0
    %952 = vmatpush1.msra.mxu0 0.0
    %953 = vmatprep.subr.mxu0 0.0
    %954 = vmatpush1.msra.mxu0 0.0
    %955 = vmatprep.subr.mxu0 0.0
    %956 = vmatpush1.msra.mxu0 0.0
    %957 = vmatprep.subr.mxu0 0.0
    %958 = vmatpush1.msra.mxu0 0.0
    %959 = vmatprep.subr.mxu0 0.0
    %960 = vmatpush1.msra.mxu0 0.0
    %961 = vmatprep.subr.mxu0 0.0
    %962 = vmatpush1.msra.mxu0 0.0
    %963 = vmatprep.subr.mxu0 0.0
    %964 = vmatpush1.msra.mxu0 0.0
    %965 = vmatprep.subr.mxu0 0.0
    %966 = vmatpush1.msra.mxu0 0.0
    %967 = vmatprep.subr.mxu0 0.0
    %968 = vmatpush1.msra.mxu0 0.0
    %969 = vmatprep.subr.mxu0 0.0
    %970 = vmatpush1.msra.mxu0 0.0
    %971 = vmatprep.subr.mxu0 0.0
    %972 = vmatpush1.msra.mxu0 0.0
    %973 = vmatprep.subr.mxu0 0.0
    %974 = vmatpush1.msra.mxu0 0.0
    %975 = vmatprep.subr.mxu0 0.0
    %976 = vmatpush1.msra.mxu0 0.0
    %977 = vmatprep.subr.mxu0 0.0
    %978 = vmatpush1.msra.mxu0 0.0
    %979 = vmatprep.mubr.f32.mxu0 0.0
    %980 = vmatmul.mubr.f32.gmra.mrb[0].mxu0 %v873
    %v981 = vpop.f32.mrb[0].mxu0
    %v982 = vadd.f32 0.0, %v981
    %v983 = vpop.f32.mrb[0].mxu0
    %v984 = vadd.f32 0.0, %v983
    %985 = vdwg.mxu0
    %v986 = vstv %s882
    %v987 = vmul.f32 %v986, %v62
    %v988 = vadd.f32 %v987, %v982
    %v989 = vadd.f32 %v988, %v63
    %s990 = smul.f32 %s882, %s64
    %v991 = vstv %s990
    %v992 = vadd.f32 %v991, %v984
    %v993 = vadd.f32 %v992, %v180
    %vm994 = vcmp.eq.s32.totalorder %v67, 7
    %v995 = vld [vmem:[#allocation9] sm:$0x1]
    %v996 = vsel %vm994, %v993, %v995
    %997 = vst [vmem:[#allocation9] sm:$0x1] %v996
    %998 = vst [vmem:[#allocation10] sm:$0x1] %v989
    // Predicated region
    $region34: #{tpu_custom_call.1} parent=1 // pred_check
      _
    $region35: #{tpu_custom_call.1} parent=1 // pred_check_branch
      %1000 = sbr.rel (0) target = $region37
    $region36: #{tpu_custom_call.1} parent=1 // pred_region
      %s1002 = ssub.s32 16, 16
      %1003 = vsyncadd [#allocation4], %s1002
      %s1005 = sshll.u32 [#allocation9], 4
      %s1006 = int_to_ptr.vmem [resolvable:$true] %s1005
      %1008 = dma.vmem_to_hbm [thread:$0]  %s1006, 16, %s5, [#allocation4]
    $region37: #{tpu_custom_call.1} parent=1 // pred_fallthru
      _
    // Predicated region
    $region38: #{tpu_custom_call.1} parent=1 // pred_check
      _
    $region39: #{tpu_custom_call.1} parent=1 // pred_check_branch
      %1010 = sbr.rel (0) target = $region41
    $region40: #{tpu_custom_call.1} parent=1 // pred_region
      %s1012 = ssub.s32 16, 16
      %1013 = vsyncadd [#allocation11], %s1012
      %s1015 = sshll.u32 [#allocation10], 4
      %s1016 = int_to_ptr.vmem [resolvable:$true] %s1015
      %1018 = dma.vmem_to_hbm [thread:$0]  %s1016, 16, %s6, [#allocation11]
    $region41: #{tpu_custom_call.1} parent=1 // pred_fallthru
      _
    // Predicated region
    $region42: #{tpu_custom_call.1} parent=1 // pred_check
      _
    $region43: #{tpu_custom_call.1} parent=1 // pred_check_branch
      %1020 = sbr.rel (0) target = $region45
    $region44: #{tpu_custom_call.1} parent=1 // pred_region
      %1021 = dma.done [#allocation4], 16
    $region45: #{tpu_custom_call.1} parent=1 // pred_fallthru
      _
    // Predicated region
    $region46: #{tpu_custom_call.1} parent=1 // pred_check
      _
    $region47: #{tpu_custom_call.1} parent=1 // pred_check_branch
      %1023 = sbr.rel (0) target = $region49
    $region48: #{tpu_custom_call.1} parent=1 // pred_region
      %1024 = dma.done [#allocation11], 16
    $region49: #{tpu_custom_call.1} parent=1 // pred_fallthru
      _
    %1025 = vsyncpa [#allocation3], 1
    %1026 = vsyncpa [#allocation4], 1
    %1027 = vsyncpa [#allocation11], 1
    %1028 = vsyncpa [#allocation5], 1
    %1029 = vsyncpa [#allocation6], 1

</llo_original>
